<compile_context>
chip_gen: v7x
topology: tpu7x:2x2x1
jax: 0.10.0
libtpu: 0.0.40
codegen_flags: <defaults>
</compile_context>

<pallas_src>
import jax
import jax.numpy as jnp
from jax import lax
from jax.experimental import pallas as pl
from jax.experimental.pallas import tpu as pltpu

block_size = 256   # max context (only bounds T)
n_embed = 384      # embedding dim C (matches the PyTorch module)
head_size = 64     # head dim
LANE = 128         # padded head slot (lane-tile width)


def _head_kernel(x_ref, wqkv_ref, o_ref):
    # x_ref:    (Bb, T, C)   f32  -- Bb batch elements per grid step
    # wqkv_ref: (C, 3*LANE)  bf16 -- [Wq*scale | Wk | Wv], each zero-padded to 128 lanes
    # o_ref:    (Bb, T, LANE) f32 -- lane-dense (padded) output slab
    Bb, T, C = x_ref.shape
    Hp = o_ref.shape[-1]

    # Fused QKV projection: one (Bb*T, C) x (C, 3*Hp) MXU pass, f32 accumulation.
    # Cast x to bf16 on the VPU here (no separate HBM cast pass in the wrapper).
    x2d = x_ref[...].astype(jnp.bfloat16).reshape(Bb * T, C)
    qkv = jnp.dot(x2d, wqkv_ref[...], preferred_element_type=jnp.float32)

    # Lane-tile-aligned 128-wide slices (scale already folded into Wq).
    q_all = qkv[:, 0:Hp].astype(jnp.bfloat16)
    k_all = qkv[:, Hp:2 * Hp].astype(jnp.bfloat16)
    v_all = qkv[:, 2 * Hp:3 * Hp].astype(jnp.bfloat16)

    # Causal mask (keep col <= row), built once from (T,1)/(1,T) iotas; broadcast
    # happens inside the where -- no materialized (T,T) int32 temporaries.
    row = lax.broadcasted_iota(jnp.int32, (T, 1), 0)
    col = lax.broadcasted_iota(jnp.int32, (1, T), 1)
    causal = col <= row                                      # (T, T) bool

    # Attention per packed batch element (Bb is small & static -> unrolled).
    for b in range(Bb):
        q = q_all[b * T:(b + 1) * T, :]                      # (T, Hp) bf16
        k = k_all[b * T:(b + 1) * T, :]
        v = v_all[b * T:(b + 1) * T, :]

        # q @ k^T without materializing a transposed copy of k. Padded columns
        # are zero in both q and k, so they contribute nothing.
        s = lax.dot_general(q, k, (((1,), (1,)), ((), ())),
                            preferred_element_type=jnp.float32)   # (T, T) f32

        # -inf is safe here: the diagonal is always kept, so every row's max is
        # finite (no fully-masked rows).
        s = jnp.where(causal, s, -jnp.inf)

        # Row-wise softmax in f32 (v5e has no bf16 VPU/EUP path).
        m = jnp.max(s, axis=-1, keepdims=True)
        e = jnp.exp(s - m)
        denom = jnp.sum(e, axis=-1, keepdims=True)
        p = (e * pl.reciprocal(denom, approx=True)).astype(jnp.bfloat16)

        # Dropout skipped (eval mode).

        # (T, Hp) f32, last Hp-H columns are zero (Wv padding) -> lane-dense store.
        out = jnp.dot(p, v, preferred_element_type=jnp.float32)
        o_ref[b] = out.astype(o_ref.dtype)


def _pick_batch_block(B: int, T: int, C: int, itemsize: int = 4) -> int:
    """Largest divisor of B whose f32 x-block stays under ~2 MiB, while keeping
    >= 2 grid steps when B >= 2 (so both v7x TensorCores get work)."""
    target_bytes = 2 * 1024 * 1024
    per_elem = T * C * itemsize
    best = 1
    for bb in range(1, B + 1):
        if B % bb != 0:
            continue
        if B >= 2 and B // bb < 2:
            continue
        if bb * per_elem > target_bytes:
            continue
        best = bb
    return best


def head_forward(x, wq_t, wk_t, wv_t, *, batch_block=None):
    """x: (B, T, C) f32.  wq_t/wk_t/wv_t: (C, H) f32 (= W.T of nn.Linear, bias=False).
    Returns (B, T, H) f32.  Matches the PyTorch eval-mode forward; bf16 MXU inputs
    + approx reciprocal give ~1e-3..1e-2 level deviation vs a pure-f32 reference."""
    B, T, C = x.shape
    H = wq_t.shape[1]
    assert T <= block_size
    assert T % 8 == 0 and C % 128 == 0, "block layout expects (8,128)-friendly T, C"
    assert H <= LANE

    bb = _pick_batch_block(B, T, C) if batch_block is None else batch_block
    assert B % bb == 0

    # Fold the PyTorch C**-0.5 score scale (embedding dim, NOT head_size) into Wq:
    # a one-time (C,H) weight fold, free at runtime.
    scale = C ** -0.5
    pad = ((0, 0), (0, LANE - H))
    w_qkv = jnp.concatenate(
        [jnp.pad(wq_t * scale, pad),
         jnp.pad(wk_t, pad),
         jnp.pad(wv_t, pad)],
        axis=1,
    ).astype(jnp.bfloat16)                                   # (C, 3*LANE)

    out_padded = pl.pallas_call(
        _head_kernel,
        out_shape=jax.ShapeDtypeStruct((B, T, LANE), x.dtype),
        grid_spec=pltpu.PrefetchScalarGridSpec(
            num_scalar_prefetch=0,
            grid=(B // bb,),
            in_specs=[
                pl.BlockSpec((bb, T, C), lambda i: (i, 0, 0)),
                pl.BlockSpec((C, 3 * LANE), lambda i: (0, 0)),
            ],
            out_specs=pl.BlockSpec((bb, T, LANE), lambda i: (i, 0, 0)),
        ),
        compiler_params=pltpu.CompilerParams(
            dimension_semantics=("parallel",),
        ),
    )(x, w_qkv)

    # Strip the zero pad (layout plumbing only; the kernel store stays lane-dense).
    return out_padded[..., :H]


def head_reference(x, wq_t, wk_t, wv_t):
    """Pure-JAX f32 reference matching the PyTorch forward (eval mode)."""
    B, T, C = x.shape
    q = x @ wq_t
    k = x @ wk_t
    v = x @ wv_t
    wei = (q @ jnp.swapaxes(k, -2, -1)) * (C ** -0.5)
    mask = jnp.tril(jnp.ones((T, T), dtype=bool))
    wei = jnp.where(mask, wei, -jnp.inf)
    wei = jax.nn.softmax(wei, axis=-1)
    return wei @ v


if __name__ == "__main__":
    key = jax.random.PRNGKey(0)
    kx, kq, kk, kv = jax.random.split(key, 4)

    B, T, C, H = 4, 128, n_embed, head_size

    x = jax.random.normal(kx, (B, T, C), dtype=jnp.float32)
    # nn.Linear(n_embed, head_size, bias=False) weight shape is (H, C);
    # we store its transpose (C, H) for the kernel.
    bound = 1.0 / (C ** 0.5)
    wq_t = jax.random.uniform(kq, (C, H), jnp.float32, -bound, bound)
    wk_t = jax.random.uniform(kk, (C, H), jnp.float32, -bound, bound)
    wv_t = jax.random.uniform(kv, (C, H), jnp.float32, -bound, bound)

    out = head_forward(x, wq_t, wk_t, wv_t)
    out = jax.block_until_ready(out)

    ref = head_reference(x, wq_t, wk_t, wv_t)
    assert out.shape == (B, T, H)
    # bf16 MXU inputs + approx reciprocal change numerics slightly vs the pure-f32
    # reference; tolerance reflects bf16 (~2^-9) input rounding.
    assert jnp.allclose(out, ref, atol=2e-2, rtol=2e-2), "mismatch vs reference"

    print("KERNEL_OK")
</pallas_src>

<mosaic_0001>
module attributes {stable_mosaic.version = 11 : i64} {
  func.func @_head_kernel(%arg0: i32, %arg1: memref<2x128x384xf32, #tpu.memory_space<vmem>>, %arg2: memref<384x384xbf16, #tpu.memory_space<vmem>>, %arg3: memref<2x128x128xf32, #tpu.memory_space<vmem>>) attributes {dimension_semantics = [#tpu.dimension_semantics<parallel>], iteration_bounds = array<i64: 2>, scalar_prefetch = 0 : i64, scratch_operands = 0 : i64, tpu.core_type = #tpu.core_type<tc>, window_params = [{transform_indices = @transform_0, window_bounds = array<i64: 2, 128, 384>}, {pipeline_mode = #tpu.pipeline_mode<synchronous>, transform_indices = @transform_1, window_bounds = array<i64: 384, 384>}, {transform_indices = @transform_2, window_bounds = array<i64: 2, 128, 128>}]} {
    %c0 = arith.constant 0 : index
    %c0_0 = arith.constant 0 : index
    %c0_1 = arith.constant 0 : index
    %0 = vector.load %arg1[%c0, %c0_0, %c0_1] : memref<2x128x384xf32, #tpu.memory_space<vmem>>, vector<2x128x384xf32>
    %1 = arith.truncf %0 : vector<2x128x384xf32> to vector<2x128x384xbf16>
    %2 = vector.shape_cast %1 : vector<2x128x384xbf16> to vector<256x384xbf16>
    %c0_2 = arith.constant 0 : index
    %c0_3 = arith.constant 0 : index
    %3 = vector.load %arg2[%c0_2, %c0_3] : memref<384x384xbf16, #tpu.memory_space<vmem>>, vector<384x384xbf16>
    %cst = arith.constant dense<0.000000e+00> : vector<256x384xf32>
    %4 = tpu.matmul %2, %3, %cst {dimension_numbers = #tpu.dot_dimension_numbers<[1], [0], [0], [1], [0, 0, 1, 1], [], []>} : vector<256x384xbf16>, vector<384x384xbf16>, vector<256x384xf32> -> vector<256x384xf32>
    %5 = vector.extract_strided_slice %4 {offsets = [0, 0], sizes = [256, 128], strides = [1, 1]} : vector<256x384xf32> to vector<256x128xf32>
    %6 = arith.truncf %5 : vector<256x128xf32> to vector<256x128xbf16>
    %7 = vector.extract_strided_slice %4 {offsets = [0, 128], sizes = [256, 128], strides = [1, 1]} : vector<256x384xf32> to vector<256x128xf32>
    %8 = arith.truncf %7 : vector<256x128xf32> to vector<256x128xbf16>
    %9 = vector.extract_strided_slice %4 {offsets = [0, 256], sizes = [256, 128], strides = [1, 1]} : vector<256x384xf32> to vector<256x128xf32>
    %10 = arith.truncf %9 : vector<256x128xf32> to vector<256x128xbf16>
    %11 = tpu.iota {dimensions = array<i32: 0>} : vector<128x1xi32>
    %12 = tpu.iota {dimensions = array<i32: 1>} : vector<1x128xi32>
    %13 = vector.broadcast %12 : vector<1x128xi32> to vector<128x128xi32>
    %14 = vector.broadcast %11 : vector<128x1xi32> to vector<128x128xi32>
    %15 = arith.cmpi sle, %13, %14 : vector<128x128xi32>
    %16 = vector.extract_strided_slice %6 {offsets = [0, 0], sizes = [128, 128], strides = [1, 1]} : vector<256x128xbf16> to vector<128x128xbf16>
    %17 = vector.extract_strided_slice %8 {offsets = [0, 0], sizes = [128, 128], strides = [1, 1]} : vector<256x128xbf16> to vector<128x128xbf16>
    %18 = vector.extract_strided_slice %10 {offsets = [0, 0], sizes = [128, 128], strides = [1, 1]} : vector<256x128xbf16> to vector<128x128xbf16>
    %cst_4 = arith.constant dense<0.000000e+00> : vector<128x128xf32>
    %19 = tpu.matmul %16, %17, %cst_4 {dimension_numbers = #tpu.dot_dimension_numbers<[1], [1], [0], [0], [0, 0, 1, 0], [], []>} : vector<128x128xbf16>, vector<128x128xbf16>, vector<128x128xf32> -> vector<128x128xf32>
    %cst_5 = arith.constant 0xFF800000 : f32
    %20 = vector.broadcast %cst_5 : f32 to vector<128x128xf32>
    %21 = arith.select %15, %19, %20 : vector<128x128xi1>, vector<128x128xf32>
    %cst_6 = arith.constant dense<0xFF800000> : vector<128xf32>
    %22 = vector.multi_reduction <maximumf>, %21, %cst_6 [1] : vector<128x128xf32> to vector<128xf32>
    %23 = vector.shape_cast %22 : vector<128xf32> to vector<128x1xf32>
    %24 = vector.broadcast %23 : vector<128x1xf32> to vector<128x128xf32>
    %25 = arith.subf %21, %24 : vector<128x128xf32>
    %26 = math.exp %25 : vector<128x128xf32>
    %cst_7 = arith.constant dense<0.000000e+00> : vector<128xf32>
    %27 = vector.multi_reduction <add>, %26, %cst_7 [1] : vector<128x128xf32> to vector<128xf32>
    %28 = vector.shape_cast %27 : vector<128xf32> to vector<128x1xf32>
    %29 = tpu.reciprocal %28 {approx = true} : vector<128x1xf32> -> vector<128x1xf32>
    %30 = vector.broadcast %29 : vector<128x1xf32> to vector<128x128xf32>
    %31 = arith.mulf %26, %30 : vector<128x128xf32>
    %32 = arith.truncf %31 : vector<128x128xf32> to vector<128x128xbf16>
    %cst_8 = arith.constant dense<0.000000e+00> : vector<128x128xf32>
    %33 = tpu.matmul %32, %18, %cst_8 {dimension_numbers = #tpu.dot_dimension_numbers<[1], [0], [0], [1], [0, 0, 1, 1], [], []>} : vector<128x128xbf16>, vector<128x128xbf16>, vector<128x128xf32> -> vector<128x128xf32>
    %c0_9 = arith.constant 0 : index
    %c0_10 = arith.constant 0 : index
    %c0_11 = arith.constant 0 : index
    %34 = vector.load %arg3[%c0_9, %c0_10, %c0_11] : memref<2x128x128xf32, #tpu.memory_space<vmem>>, vector<1x128x128xf32>
    %35 = vector.shape_cast %34 : vector<1x128x128xf32> to vector<128x128xf32>
    %36 = vector.shape_cast %33 : vector<128x128xf32> to vector<1x128x128xf32>
    tpu.vector_store %arg3[%c0_9, %c0_10, %c0_11], %36 {strides = array<i32>} : memref<2x128x128xf32, #tpu.memory_space<vmem>>, vector<1x128x128xf32>,
    %37 = vector.extract_strided_slice %6 {offsets = [128, 0], sizes = [128, 128], strides = [1, 1]} : vector<256x128xbf16> to vector<128x128xbf16>
    %38 = vector.extract_strided_slice %8 {offsets = [128, 0], sizes = [128, 128], strides = [1, 1]} : vector<256x128xbf16> to vector<128x128xbf16>
    %39 = vector.extract_strided_slice %10 {offsets = [128, 0], sizes = [128, 128], strides = [1, 1]} : vector<256x128xbf16> to vector<128x128xbf16>
    %cst_12 = arith.constant dense<0.000000e+00> : vector<128x128xf32>
    %40 = tpu.matmul %37, %38, %cst_12 {dimension_numbers = #tpu.dot_dimension_numbers<[1], [1], [0], [0], [0, 0, 1, 0], [], []>} : vector<128x128xbf16>, vector<128x128xbf16>, vector<128x128xf32> -> vector<128x128xf32>
    %cst_13 = arith.constant 0xFF800000 : f32
    %41 = vector.broadcast %cst_13 : f32 to vector<128x128xf32>
    %42 = arith.select %15, %40, %41 : vector<128x128xi1>, vector<128x128xf32>
    %cst_14 = arith.constant dense<0xFF800000> : vector<128xf32>
    %43 = vector.multi_reduction <maximumf>, %42, %cst_14 [1] : vector<128x128xf32> to vector<128xf32>
    %44 = vector.shape_cast %43 : vector<128xf32> to vector<128x1xf32>
    %45 = vector.broadcast %44 : vector<128x1xf32> to vector<128x128xf32>
    %46 = arith.subf %42, %45 : vector<128x128xf32>
    %47 = math.exp %46 : vector<128x128xf32>
    %cst_15 = arith.constant dense<0.000000e+00> : vector<128xf32>
    %48 = vector.multi_reduction <add>, %47, %cst_15 [1] : vector<128x128xf32> to vector<128xf32>
    %49 = vector.shape_cast %48 : vector<128xf32> to vector<128x1xf32>
    %50 = tpu.reciprocal %49 {approx = true} : vector<128x1xf32> -> vector<128x1xf32>
    %51 = vector.broadcast %50 : vector<128x1xf32> to vector<128x128xf32>
    %52 = arith.mulf %47, %51 : vector<128x128xf32>
    %53 = arith.truncf %52 : vector<128x128xf32> to vector<128x128xbf16>
    %cst_16 = arith.constant dense<0.000000e+00> : vector<128x128xf32>
    %54 = tpu.matmul %53, %39, %cst_16 {dimension_numbers = #tpu.dot_dimension_numbers<[1], [0], [0], [1], [0, 0, 1, 1], [], []>} : vector<128x128xbf16>, vector<128x128xbf16>, vector<128x128xf32> -> vector<128x128xf32>
    %c1 = arith.constant 1 : index
    %c0_17 = arith.constant 0 : index
    %c0_18 = arith.constant 0 : index
    %55 = vector.load %arg3[%c1, %c0_17, %c0_18] : memref<2x128x128xf32, #tpu.memory_space<vmem>>, vector<1x128x128xf32>
    %56 = vector.shape_cast %55 : vector<1x128x128xf32> to vector<128x128xf32>
    %57 = vector.shape_cast %54 : vector<128x128xf32> to vector<1x128x128xf32>
    tpu.vector_store %arg3[%c1, %c0_17, %c0_18], %57 {strides = array<i32>} : memref<2x128x128xf32, #tpu.memory_space<vmem>>, vector<1x128x128xf32>,
    return
  }
  func.func @transform_0(%arg0: i32) -> (i32, i32, i32) {
    %c0_i32 = arith.constant 0 : i32
    %c0_i32_0 = arith.constant 0 : i32
    %c0_i32_1 = arith.constant 0 : i32
    return %arg0, %c0_i32, %c0_i32_0 : i32, i32, i32
  }
  func.func @transform_1(%arg0: i32) -> (i32, i32) {
    %c0_i32 = arith.constant 0 : i32
    %c0_i32_0 = arith.constant 0 : i32
    %c0_i32_1 = arith.constant 0 : i32
    return %c0_i32, %c0_i32_0 : i32, i32
  }
  func.func @transform_2(%arg0: i32) -> (i32, i32, i32) {
    %c0_i32 = arith.constant 0 : i32
    %c0_i32_0 = arith.constant 0 : i32
    %c0_i32_1 = arith.constant 0 : i32
    return %arg0, %c0_i32, %c0_i32_0 : i32, i32, i32
  }
}

</mosaic_0001>

<llo_original>
// kernel: tpu_custom_call.1
$region0: #{tpu_custom_call.1}
  #allocation0 [shape = 'u32[]', space=smem, size = 0x4, offset = 0x4, fixed_abs, tag = 'smem constant byte address 0x4 - core index']
  #allocation1 [shape = 'u32[144,128]{1,0:T(1,128)}', space=vmem, size = 0x12000, scoped, tag = 'internal scratch']
  %s0 = inlined_call_operand.hbm [shape: f32[4,128,384], index: 0, kind: input, shape index: {}]
  %s1 = inlined_call_operand.hbm [shape: bf16[384,384], index: 1, kind: input, shape index: {}]
  %s2 = inlined_call_operand.hbm [shape: f32[4,128,128], index: 2, kind: output, shape index: {}]
  %s3 = sld [smem:[#allocation0]]
  $region49: #{tpu_custom_call.1} parent=0
    _
  %s5 = ssub.s32 1, %s3
  %s6 = scalar_select 0, %s5, %s3
  $region1: #{tpu_custom_call.1} parent=0
    #allocation2 [shape = 'u8[786432]{0}', space=vmem, size = 0xc0000, scoped, tag = 'input window, operand 0']
    #allocation3 [shape = 's32[2]{0}', space=sflag, size = 0x8, scoped, tag = 'scoped memory for tpu_custom_call.1']
    #allocation4 [shape = 's32[2]{0}', space=sflag, size = 0x8, scoped, tag = 'scoped memory for tpu_custom_call.1']
    #allocation5 [shape = 'u8[294912]{0}', space=vmem, size = 0x48000, scoped, tag = 'input window, operand 1, single buffered']
    #allocation6 [shape = 's32[1]{0}', space=sflag, size = 0x4, scoped, tag = 'scoped memory for tpu_custom_call.1']
    #allocation7 [shape = 'u8[262144]{0}', space=vmem, size = 0x40000, scoped, tag = 'output window, operand 0']
    %7 = vsyncpa [#allocation3], 0
    %s8 = scalar_lea.sflag [#allocation3], 1
    %9 = vsyncpa %s8, 0
    %10 = vsyncpa [#allocation6], 0
    %11 = vsyncpa [#allocation4], 0
    %s12 = scalar_lea.sflag [#allocation4], 1
    %13 = vsyncpa %s12, 0
    loop: start=0, step=1, limit=4
    $region2: #{tpu_custom_call.1} parent=1 // loop_pre_header
      _
    $region3: #{tpu_custom_call.1} parent=1 // loop_header
      %s15 = sphi 0, %s19
      %p16 = scmp.ge.s32.totalorder %s15, 4
      %s25 = sphi 0, %s27
      %s28 = sphi 0, %s25
      %s29 = sphi 0, %s28
      %s45 = sphi 0, %s29
      %s49 = sphi 0, %s49
      %s51 = sphi 0, %s49
      %s52 = sphi 0, %s51
      %s66 = sphi 0, %s52
      %s72 = sphi 0, %s74
      %s75 = sphi 0, %s72
      %s76 = sphi 0, %s75
      %s92 = sphi 0, %s76
    $region4: #{tpu_custom_call.1} parent=1 // loop_header_branch
      %18 = sbr.rel (%p16) target = $region8
    $region5: #{tpu_custom_call.1} parent=1 // loop_body
      %s20 = ssub.s32 %s15, 1
      %s21 = ssub.s32 %s15, 2
      %s22 = sadd.s32 %s15, 1
      %s23 = ssub.s32 %s15, %s22
      %p24 = scmp.eq.s32.totalorder %s23, 0
      %s26 = sadd.s32 %s25, 1
      %s27 = scalar_select %p24, %s25, %s26
      %p30 = pneg %p24
      %p31 = scmp.eq.s32.totalorder %s15, 1
      %p32 = por %p30, %p31
      %p33 = scmp.ne.s32.totalorder %s25, %s28
      %p34 = scmp.eq.s32.totalorder %s15, 0
      %p35 = por %p33, %p34
      %p36 = scmp.ne.s32.totalorder %s25, %s28
      %p37 = scmp.eq.s32.totalorder %s20, 1
      %p38 = por %p36, %p37
      %p39 = scmp.ne.s32.totalorder %s28, %s29
      %p40 = scmp.eq.s32.totalorder %s20, 0
      %p41 = por %p39, %p40
      %p42 = scmp.ne.s32.totalorder %s28, %s29
      %p43 = scmp.eq.s32.totalorder %s21, 1
      %p44 = por %p42, %p43
      %p46 = scmp.ne.s32.totalorder %s29, %s45
      %p47 = scmp.eq.s32.totalorder %s21, 0
      %p48 = por %p46, %p47
      %s50 = sadd.s32 %s49, 1
      %p53 = scmp.eq.s32.totalorder %s15, 1
      %p54 = scmp.ne.s32.totalorder %s49, %s51
      %p55 = scmp.eq.s32.totalorder %s15, 0
      %p56 = por %p54, %p55
      %p57 = scmp.ne.s32.totalorder %s49, %s51
      %p58 = scmp.eq.s32.totalorder %s20, 1
      %p59 = por %p57, %p58
      %p60 = scmp.ne.s32.totalorder %s51, %s52
      %p61 = scmp.eq.s32.totalorder %s20, 0
      %p62 = por %p60, %p61
      %p63 = scmp.ne.s32.totalorder %s51, %s52
      %p64 = scmp.eq.s32.totalorder %s21, 1
      %p65 = por %p63, %p64
      %p67 = scmp.ne.s32.totalorder %s52, %s66
      %p68 = scmp.eq.s32.totalorder %s21, 0
      %p69 = por %p67, %p68
      %s70 = ssub.s32 %s15, %s22
      %p71 = scmp.eq.s32.totalorder %s70, 0
      %s73 = sadd.s32 %s72, 1
      %s74 = scalar_select %p71, %s72, %s73
      %p77 = pneg %p71
      %p78 = scmp.eq.s32.totalorder %s15, 1
      %p79 = por %p77, %p78
      %p80 = scmp.ne.s32.totalorder %s72, %s75
      %p81 = scmp.eq.s32.totalorder %s15, 0
      %p82 = por %p80, %p81
      %p83 = scmp.ne.s32.totalorder %s72, %s75
      %p84 = scmp.eq.s32.totalorder %s20, 1
      %p85 = por %p83, %p84
      %p86 = scmp.ne.s32.totalorder %s75, %s76
      %p87 = scmp.eq.s32.totalorder %s20, 0
      %p88 = por %p86, %p87
      %p89 = scmp.ne.s32.totalorder %s75, %s76
      %p90 = scmp.eq.s32.totalorder %s21, 1
      %p91 = por %p89, %p90
      %p93 = scmp.ne.s32.totalorder %s76, %s92
      %p94 = scmp.eq.s32.totalorder %s21, 0
      %p95 = por %p93, %p94
      %p96 = scmp.le.s32.totalorder 1, %s15
      %p97 = scmp.lt.s32.totalorder %s15, 3
      %p98 = pnand %p96, %p97
      %p99 = pneg %p98
      // Predicated region
      $region9: #{tpu_custom_call.1} parent=5 // pred_check
        _
      $region10: #{tpu_custom_call.1} parent=5 // pred_check_branch
        %101 = sbr.rel (%p98) target = $region12
      $region11: #{tpu_custom_call.1} parent=5 // pred_region
        %s102 = ssub.s32 %s15, 1
        // Predicated region
        $region13: #{tpu_custom_call.1} parent=11 // pred_check
          %p103 = pneg %p62
        $region14: #{tpu_custom_call.1} parent=11 // pred_check_branch
          %105 = sbr.rel (%p103) target = $region16
        $region15: #{tpu_custom_call.1} parent=11 // pred_region
          %s107 = ssub.s32 9216, 9216
          %108 = vsyncadd [#allocation6], %s107
          %s109 = sshll.u32 [#allocation5], 4
          %s110 = int_to_ptr.vmem [resolvable:$true] %s109
          %115 = dma.hbm_to_vmem [thread:$0]  %s1, 9216, %s110, [#allocation6], 192, 192, 12
        $region16: #{tpu_custom_call.1} parent=11 // pred_fallthru
          _
      $region12: #{tpu_custom_call.1} parent=5 // pred_fallthru
        _
      %p116 = scmp.lt.s32.totalorder %s15, 2
      // Predicated region
      $region17: #{tpu_custom_call.1} parent=5 // pred_check
        %p117 = pneg %p116
      $region18: #{tpu_custom_call.1} parent=5 // pred_check_branch
        %119 = sbr.rel (%p117) target = $region20
      $region19: #{tpu_custom_call.1} parent=5 // pred_region
        // Predicated region
        $region21: #{tpu_custom_call.1} parent=19 // pred_check
          %p120 = pneg %p35
        $region22: #{tpu_custom_call.1} parent=19 // pred_check_branch
          %122 = sbr.rel (%p120) target = $region24
        $region23: #{tpu_custom_call.1} parent=19 // pred_region
          %s123 = sand.u32 %s25, 1
          %s124 = scalar_lea.sflag [#allocation3], %s123
          %s125 = sand.u32 %s25, 1
          %s126 = smul.addr %s125, 768
          %s127 = scalar_lea.vmem [#allocation2], %s126
          %s128 = smul.u32 2, %s15
          %s130 = ssub.s32 12288, 12288
          %131 = vsyncadd %s124, %s130
          %s132 = smul.addr %s128, 48
          %s133 = smul.addr %s132, 128
          %s134 = scalar_lea.hbm %s0, %s133
          %s135 = sshll.u32 %s127, 4
          %s136 = int_to_ptr.vmem [resolvable:$true] %s135
          %141 = dma.hbm_to_vmem [thread:$0]  %s134, 12288, %s136, %s124, 384, 384, 24
        $region24: #{tpu_custom_call.1} parent=19 // pred_fallthru
          _
      $region20: #{tpu_custom_call.1} parent=5 // pred_fallthru
        _
      %p142 = scmp.le.s32.totalorder 1, %s15
      %p143 = scmp.lt.s32.totalorder %s15, 3
      %p144 = pnand %p142, %p143
      %p145 = pneg %p144
      // Predicated region
      $region25: #{tpu_custom_call.1} parent=5 // pred_check
        _
      $region26: #{tpu_custom_call.1} parent=5 // pred_check_branch
        %147 = sbr.rel (%p144) target = $region28
      $region27: #{tpu_custom_call.1} parent=5 // pred_region
        %s148 = ssub.s32 %s15, 1
        %s149 = sand.u32 %s28, 1
        %s150 = scalar_lea.sflag [#allocation3], %s149
        %s151 = sand.u32 %s28, 1
        %s152 = smul.addr %s151, 768
        %s153 = scalar_lea.vmem [#allocation2], %s152
        // Predicated region
        $region29: #{tpu_custom_call.1} parent=27 // pred_check
          %p154 = pneg %p41
        $region30: #{tpu_custom_call.1} parent=27 // pred_check_branch
          %156 = sbr.rel (%p154) target = $region32
        $region31: #{tpu_custom_call.1} parent=27 // pred_region
          %157 = dma.done %s150, 12288
        $region32: #{tpu_custom_call.1} parent=27 // pred_fallthru
          _
        // Predicated region
        $region33: #{tpu_custom_call.1} parent=27 // pred_check
          %p158 = pneg %p62
        $region34: #{tpu_custom_call.1} parent=27 // pred_check_branch
          %160 = sbr.rel (%p158) target = $region36
        $region35: #{tpu_custom_call.1} parent=27 // pred_region
          %161 = dma.done [#allocation6], 9216
        $region36: #{tpu_custom_call.1} parent=27 // pred_fallthru
          _
        %s162 = sand.u32 %s28, 1
        %s163 = scalar_lea.sflag [#allocation3], %s162
        %s164 = sand.u32 %s28, 1
        %s165 = smul.addr %s164, 768
        %s166 = scalar_lea.vmem [#allocation2], %s165
        %p167 = pneg %p41
        %p168 = pneg %p38
        %p169 = pneg %p62
        %p170 = pneg %p59
        %p171 = pneg %p88
        %p172 = pneg %p85
        %s173 = sand.u32 %s75, 1
        %s174 = scalar_lea.sflag [#allocation4], %s173
        %s175 = sand.u32 %s75, 1
        %s176 = smul.addr %s175, 256
        %s177 = scalar_lea.vmem [#allocation7], %s176
        %s178 = smul.u32 2, %s20
        %s179 = smul.u32 2, %s20
        %v181 = vld [vmem:[%s153] sm:$0xff]
        %v182 = vld [vmem:[%s153 + $0x8] sm:$0xff]
        %v183 = vld [vmem:[%s153 + $0x10] sm:$0xff]
        %v184 = vld [vmem:[%s153 + $0x18] sm:$0xff]
        %v185 = vld [vmem:[%s153 + $0x20] sm:$0xff]
        %v186 = vld [vmem:[%s153 + $0x28] sm:$0xff]
        %v187 = vld [vmem:[%s153 + $0x30] sm:$0xff]
        %v188 = vld [vmem:[%s153 + $0x38] sm:$0xff]
        %v189 = vld [vmem:[%s153 + $0x40] sm:$0xff]
        %v190 = vld [vmem:[%s153 + $0x48] sm:$0xff]
        %v191 = vld [vmem:[%s153 + $0x50] sm:$0xff]
        %v192 = vld [vmem:[%s153 + $0x58] sm:$0xff]
        %v193 = vld [vmem:[%s153 + $0x60] sm:$0xff]
        %v194 = vld [vmem:[%s153 + $0x68] sm:$0xff]
        %v195 = vld [vmem:[%s153 + $0x70] sm:$0xff]
        %v196 = vld [vmem:[%s153 + $0x78] sm:$0xff]
        %v197 = vld [vmem:[%s153 + $0x80] sm:$0xff]
        %v198 = vld [vmem:[%s153 + $0x88] sm:$0xff]
        %v199 = vld [vmem:[%s153 + $0x90] sm:$0xff]
        %v200 = vld [vmem:[%s153 + $0x98] sm:$0xff]
        %v201 = vld [vmem:[%s153 + $0xa0] sm:$0xff]
        %v202 = vld [vmem:[%s153 + $0xa8] sm:$0xff]
        %v203 = vld [vmem:[%s153 + $0xb0] sm:$0xff]
        %v204 = vld [vmem:[%s153 + $0xb8] sm:$0xff]
        %v205 = vld [vmem:[%s153 + $0xc0] sm:$0xff]
        %v206 = vld [vmem:[%s153 + $0xc8] sm:$0xff]
        %v207 = vld [vmem:[%s153 + $0xd0] sm:$0xff]
        %v208 = vld [vmem:[%s153 + $0xd8] sm:$0xff]
        %v209 = vld [vmem:[%s153 + $0xe0] sm:$0xff]
        %v210 = vld [vmem:[%s153 + $0xe8] sm:$0xff]
        %v211 = vld [vmem:[%s153 + $0xf0] sm:$0xff]
        %v212 = vld [vmem:[%s153 + $0xf8] sm:$0xff]
        %v213 = vld [vmem:[%s153 + $0x100] sm:$0xff]
        %v214 = vld [vmem:[%s153 + $0x108] sm:$0xff]
        %v215 = vld [vmem:[%s153 + $0x110] sm:$0xff]
        %v216 = vld [vmem:[%s153 + $0x118] sm:$0xff]
        %v217 = vld [vmem:[%s153 + $0x120] sm:$0xff]
        %v218 = vld [vmem:[%s153 + $0x128] sm:$0xff]
        %v219 = vld [vmem:[%s153 + $0x130] sm:$0xff]
        %v220 = vld [vmem:[%s153 + $0x138] sm:$0xff]
        %v221 = vld [vmem:[%s153 + $0x140] sm:$0xff]
        %v222 = vld [vmem:[%s153 + $0x148] sm:$0xff]
        %v223 = vld [vmem:[%s153 + $0x150] sm:$0xff]
        %v224 = vld [vmem:[%s153 + $0x158] sm:$0xff]
        %v225 = vld [vmem:[%s153 + $0x160] sm:$0xff]
        %v226 = vld [vmem:[%s153 + $0x168] sm:$0xff]
        %v227 = vld [vmem:[%s153 + $0x170] sm:$0xff]
        %v228 = vld [vmem:[%s153 + $0x178] sm:$0xff]
        %v229 = vld [vmem:[%s153 + $0x180] sm:$0xff]
        %v230 = vld [vmem:[%s153 + $0x188] sm:$0xff]
        %v231 = vld [vmem:[%s153 + $0x190] sm:$0xff]
        %v232 = vld [vmem:[%s153 + $0x198] sm:$0xff]
        %v233 = vld [vmem:[%s153 + $0x1a0] sm:$0xff]
        %v234 = vld [vmem:[%s153 + $0x1a8] sm:$0xff]
        %v235 = vld [vmem:[%s153 + $0x1b0] sm:$0xff]
        %v236 = vld [vmem:[%s153 + $0x1b8] sm:$0xff]
        %v237 = vld [vmem:[%s153 + $0x1c0] sm:$0xff]
        %v238 = vld [vmem:[%s153 + $0x1c8] sm:$0xff]
        %v239 = vld [vmem:[%s153 + $0x1d0] sm:$0xff]
        %v240 = vld [vmem:[%s153 + $0x1d8] sm:$0xff]
        %v241 = vld [vmem:[%s153 + $0x1e0] sm:$0xff]
        %v242 = vld [vmem:[%s153 + $0x1e8] sm:$0xff]
        %v243 = vld [vmem:[%s153 + $0x1f0] sm:$0xff]
        %v244 = vld [vmem:[%s153 + $0x1f8] sm:$0xff]
        %v245 = vld [vmem:[%s153 + $0x200] sm:$0xff]
        %v246 = vld [vmem:[%s153 + $0x208] sm:$0xff]
        %v247 = vld [vmem:[%s153 + $0x210] sm:$0xff]
        %v248 = vld [vmem:[%s153 + $0x218] sm:$0xff]
        %v249 = vld [vmem:[%s153 + $0x220] sm:$0xff]
        %v250 = vld [vmem:[%s153 + $0x228] sm:$0xff]
        %v251 = vld [vmem:[%s153 + $0x230] sm:$0xff]
        %v252 = vld [vmem:[%s153 + $0x238] sm:$0xff]
        %v253 = vld [vmem:[%s153 + $0x240] sm:$0xff]
        %v254 = vld [vmem:[%s153 + $0x248] sm:$0xff]
        %v255 = vld [vmem:[%s153 + $0x250] sm:$0xff]
        %v256 = vld [vmem:[%s153 + $0x258] sm:$0xff]
        %v257 = vld [vmem:[%s153 + $0x260] sm:$0xff]
        %v258 = vld [vmem:[%s153 + $0x268] sm:$0xff]
        %v259 = vld [vmem:[%s153 + $0x270] sm:$0xff]
        %v260 = vld [vmem:[%s153 + $0x278] sm:$0xff]
        %v261 = vld [vmem:[%s153 + $0x280] sm:$0xff]
        %v262 = vld [vmem:[%s153 + $0x288] sm:$0xff]
        %v263 = vld [vmem:[%s153 + $0x290] sm:$0xff]
        %v264 = vld [vmem:[%s153 + $0x298] sm:$0xff]
        %v265 = vld [vmem:[%s153 + $0x2a0] sm:$0xff]
        %v266 = vld [vmem:[%s153 + $0x2a8] sm:$0xff]
        %v267 = vld [vmem:[%s153 + $0x2b0] sm:$0xff]
        %v268 = vld [vmem:[%s153 + $0x2b8] sm:$0xff]
        %v269 = vld [vmem:[%s153 + $0x2c0] sm:$0xff]
        %v270 = vld [vmem:[%s153 + $0x2c8] sm:$0xff]
        %v271 = vld [vmem:[%s153 + $0x2d0] sm:$0xff]
        %v272 = vld [vmem:[%s153 + $0x2d8] sm:$0xff]
        %v273 = vld [vmem:[%s153 + $0x2e0] sm:$0xff]
        %v274 = vld [vmem:[%s153 + $0x2e8] sm:$0xff]
        %v275 = vld [vmem:[%s153 + $0x2f0] sm:$0xff]
        %v276 = vld [vmem:[%s153 + $0x2f8] sm:$0xff]
        %v277 = vpack.c.bf16 %v184, %v181
        %v278 = vpack.c.bf16 %v185, %v182
        %v279 = vpack.c.bf16 %v186, %v183
        %v280 = vpack.c.bf16 %v190, %v187
        %v281 = vpack.c.bf16 %v191, %v188
        %v282 = vpack.c.bf16 %v192, %v189
        %v283 = vpack.c.bf16 %v196, %v193
        %v284 = vpack.c.bf16 %v197, %v194
        %v285 = vpack.c.bf16 %v198, %v195
        %v286 = vpack.c.bf16 %v202, %v199
        %v287 = vpack.c.bf16 %v203, %v200
        %v288 = vpack.c.bf16 %v204, %v201
        %v289 = vpack.c.bf16 %v208, %v205
        %v290 = vpack.c.bf16 %v209, %v206
        %v291 = vpack.c.bf16 %v210, %v207
        %v292 = vpack.c.bf16 %v214, %v211
        %v293 = vpack.c.bf16 %v215, %v212
        %v294 = vpack.c.bf16 %v216, %v213
        %v295 = vpack.c.bf16 %v220, %v217
        %v296 = vpack.c.bf16 %v221, %v218
        %v297 = vpack.c.bf16 %v222, %v219
        %v298 = vpack.c.bf16 %v226, %v223
        %v299 = vpack.c.bf16 %v227, %v224
        %v300 = vpack.c.bf16 %v228, %v225
        %v301 = vpack.c.bf16 %v232, %v229
        %v302 = vpack.c.bf16 %v233, %v230
        %v303 = vpack.c.bf16 %v234, %v231
        %v304 = vpack.c.bf16 %v238, %v235
        %v305 = vpack.c.bf16 %v239, %v236
        %v306 = vpack.c.bf16 %v240, %v237
        %v307 = vpack.c.bf16 %v244, %v241
        %v308 = vpack.c.bf16 %v245, %v242
        %v309 = vpack.c.bf16 %v246, %v243
        %v310 = vpack.c.bf16 %v250, %v247
        %v311 = vpack.c.bf16 %v251, %v248
        %v312 = vpack.c.bf16 %v252, %v249
        %v313 = vpack.c.bf16 %v256, %v253
        %v314 = vpack.c.bf16 %v257, %v254
        %v315 = vpack.c.bf16 %v258, %v255
        %v316 = vpack.c.bf16 %v262, %v259
        %v317 = vpack.c.bf16 %v263, %v260
        %v318 = vpack.c.bf16 %v264, %v261
        %v319 = vpack.c.bf16 %v268, %v265
        %v320 = vpack.c.bf16 %v269, %v266
        %v321 = vpack.c.bf16 %v270, %v267
        %v322 = vpack.c.bf16 %v274, %v271
        %v323 = vpack.c.bf16 %v275, %v272
        %v324 = vpack.c.bf16 %v276, %v273
        %v325 = vld [vmem:[#allocation5] sm:$0xff]
        %v326 = vld [vmem:[#allocation5 + $0x8] sm:$0xf]
        %v327 = vld [vmem:[#allocation5 + $0xc] sm:$0xff]
        %v328 = vld [vmem:[#allocation5 + $0x14] sm:$0xf]
        %v329 = vld [vmem:[#allocation5 + $0x18] sm:$0xff]
        %v330 = vld [vmem:[#allocation5 + $0x20] sm:$0xf]
        %v331 = vld [vmem:[#allocation5 + $0x24] sm:$0xff]
        %v332 = vld [vmem:[#allocation5 + $0x2c] sm:$0xf]
        %v333 = vld [vmem:[#allocation5 + $0x30] sm:$0xff]
        %v334 = vld [vmem:[#allocation5 + $0x38] sm:$0xf]
        %v335 = vld [vmem:[#allocation5 + $0x3c] sm:$0xff]
        %v336 = vld [vmem:[#allocation5 + $0x44] sm:$0xf]
        %v337 = vld [vmem:[#allocation5 + $0x48] sm:$0xff]
        %v338 = vld [vmem:[#allocation5 + $0x50] sm:$0xf]
        %v339 = vld [vmem:[#allocation5 + $0x54] sm:$0xff]
        %v340 = vld [vmem:[#allocation5 + $0x5c] sm:$0xf]
        %v341 = vld [vmem:[#allocation5 + $0x60] sm:$0xff]
        %v342 = vld [vmem:[#allocation5 + $0x68] sm:$0xf]
        %v343 = vld [vmem:[#allocation5 + $0x6c] sm:$0xff]
        %v344 = vld [vmem:[#allocation5 + $0x74] sm:$0xf]
        %v345 = vld [vmem:[#allocation5 + $0x78] sm:$0xff]
        %v346 = vld [vmem:[#allocation5 + $0x80] sm:$0xf]
        %v347 = vld [vmem:[#allocation5 + $0x84] sm:$0xff]
        %v348 = vld [vmem:[#allocation5 + $0x8c] sm:$0xf]
        %v349 = vld [vmem:[#allocation5 + $0x90] sm:$0xff]
        %v350 = vld [vmem:[#allocation5 + $0x98] sm:$0xf]
        %v351 = vld [vmem:[#allocation5 + $0x9c] sm:$0xff]
        %v352 = vld [vmem:[#allocation5 + $0xa4] sm:$0xf]
        %v353 = vld [vmem:[#allocation5 + $0xa8] sm:$0xff]
        %v354 = vld [vmem:[#allocation5 + $0xb0] sm:$0xf]
        %v355 = vld [vmem:[#allocation5 + $0xb4] sm:$0xff]
        %v356 = vld [vmem:[#allocation5 + $0xbc] sm:$0xf]
        %v357 = vld [vmem:[#allocation5 + $0xc0] sm:$0xff]
        %v358 = vld [vmem:[#allocation5 + $0xc8] sm:$0xf]
        %v359 = vld [vmem:[#allocation5 + $0xcc] sm:$0xff]
        %v360 = vld [vmem:[#allocation5 + $0xd4] sm:$0xf]
        %v361 = vld [vmem:[#allocation5 + $0xd8] sm:$0xff]
        %v362 = vld [vmem:[#allocation5 + $0xe0] sm:$0xf]
        %v363 = vld [vmem:[#allocation5 + $0xe4] sm:$0xff]
        %v364 = vld [vmem:[#allocation5 + $0xec] sm:$0xf]
        %v365 = vld [vmem:[#allocation5 + $0xf0] sm:$0xff]
        %v366 = vld [vmem:[#allocation5 + $0xf8] sm:$0xf]
        %v367 = vld [vmem:[#allocation5 + $0xfc] sm:$0xff]
        %v368 = vld [vmem:[#allocation5 + $0x104] sm:$0xf]
        %v369 = vld [vmem:[#allocation5 + $0x108] sm:$0xff]
        %v370 = vld [vmem:[#allocation5 + $0x110] sm:$0xf]
        %v371 = vld [vmem:[#allocation5 + $0x114] sm:$0xff]
        %v372 = vld [vmem:[#allocation5 + $0x11c] sm:$0xf]
        %v373 = vld [vmem:[#allocation5 + $0x120] sm:$0xff]
        %v374 = vld [vmem:[#allocation5 + $0x128] sm:$0xf]
        %v375 = vld [vmem:[#allocation5 + $0x12c] sm:$0xff]
        %v376 = vld [vmem:[#allocation5 + $0x134] sm:$0xf]
        %v377 = vld [vmem:[#allocation5 + $0x138] sm:$0xff]
        %v378 = vld [vmem:[#allocation5 + $0x140] sm:$0xf]
        %v379 = vld [vmem:[#allocation5 + $0x144] sm:$0xff]
        %v380 = vld [vmem:[#allocation5 + $0x14c] sm:$0xf]
        %v381 = vld [vmem:[#allocation5 + $0x150] sm:$0xff]
        %v382 = vld [vmem:[#allocation5 + $0x158] sm:$0xf]
        %v383 = vld [vmem:[#allocation5 + $0x15c] sm:$0xff]
        %v384 = vld [vmem:[#allocation5 + $0x164] sm:$0xf]
        %v385 = vld [vmem:[#allocation5 + $0x168] sm:$0xff]
        %v386 = vld [vmem:[#allocation5 + $0x170] sm:$0xf]
        %v387 = vld [vmem:[#allocation5 + $0x174] sm:$0xff]
        %v388 = vld [vmem:[#allocation5 + $0x17c] sm:$0xf]
        %v389 = vld [vmem:[#allocation5 + $0x180] sm:$0xff]
        %v390 = vld [vmem:[#allocation5 + $0x188] sm:$0xf]
        %v391 = vld [vmem:[#allocation5 + $0x18c] sm:$0xff]
        %v392 = vld [vmem:[#allocation5 + $0x194] sm:$0xf]
        %v393 = vld [vmem:[#allocation5 + $0x198] sm:$0xff]
        %v394 = vld [vmem:[#allocation5 + $0x1a0] sm:$0xf]
        %v395 = vld [vmem:[#allocation5 + $0x1a4] sm:$0xff]
        %v396 = vld [vmem:[#allocation5 + $0x1ac] sm:$0xf]
        %v397 = vld [vmem:[#allocation5 + $0x1b0] sm:$0xff]
        %v398 = vld [vmem:[#allocation5 + $0x1b8] sm:$0xf]
        %v399 = vld [vmem:[#allocation5 + $0x1bc] sm:$0xff]
        %v400 = vld [vmem:[#allocation5 + $0x1c4] sm:$0xf]
        %v401 = vld [vmem:[#allocation5 + $0x1c8] sm:$0xff]
        %v402 = vld [vmem:[#allocation5 + $0x1d0] sm:$0xf]
        %v403 = vld [vmem:[#allocation5 + $0x1d4] sm:$0xff]
        %v404 = vld [vmem:[#allocation5 + $0x1dc] sm:$0xf]
        %v405 = vld [vmem:[#allocation5 + $0x1e0] sm:$0xff]
        %v406 = vld [vmem:[#allocation5 + $0x1e8] sm:$0xf]
        %v407 = vld [vmem:[#allocation5 + $0x1ec] sm:$0xff]
        %v408 = vld [vmem:[#allocation5 + $0x1f4] sm:$0xf]
        %v409 = vld [vmem:[#allocation5 + $0x1f8] sm:$0xff]
        %v410 = vld [vmem:[#allocation5 + $0x200] sm:$0xf]
        %v411 = vld [vmem:[#allocation5 + $0x204] sm:$0xff]
        %v412 = vld [vmem:[#allocation5 + $0x20c] sm:$0xf]
        %v413 = vld [vmem:[#allocation5 + $0x210] sm:$0xff]
        %v414 = vld [vmem:[#allocation5 + $0x218] sm:$0xf]
        %v415 = vld [vmem:[#allocation5 + $0x21c] sm:$0xff]
        %v416 = vld [vmem:[#allocation5 + $0x224] sm:$0xf]
        %v417 = vld [vmem:[#allocation5 + $0x228] sm:$0xff]
        %v418 = vld [vmem:[#allocation5 + $0x230] sm:$0xf]
        %v419 = vld [vmem:[#allocation5 + $0x234] sm:$0xff]
        %v420 = vld [vmem:[#allocation5 + $0x23c] sm:$0xf]
        %v517 = vunpack.c.l.b16 %v325
        %v518 = vunpack.c.h.b16 %v325
        %v519 = vunpack.c.l.b16 %v326
        %v520 = vunpack.c.l.b16 %v327
        %v521 = vunpack.c.h.b16 %v327
        %v522 = vunpack.c.l.b16 %v328
        %v523 = vunpack.c.l.b16 %v329
        %v524 = vunpack.c.h.b16 %v329
        %v525 = vunpack.c.l.b16 %v330
        %v526 = vunpack.c.l.b16 %v331
        %v527 = vunpack.c.h.b16 %v331
        %v528 = vunpack.c.l.b16 %v332
        %v529 = vunpack.c.l.b16 %v333
        %v530 = vunpack.c.h.b16 %v333
        %v531 = vunpack.c.l.b16 %v334
        %v532 = vunpack.c.l.b16 %v335
        %v533 = vunpack.c.h.b16 %v335
        %v534 = vunpack.c.l.b16 %v336
        %v535 = vunpack.c.l.b16 %v337
        %v536 = vunpack.c.h.b16 %v337
        %v537 = vunpack.c.l.b16 %v338
        %v538 = vunpack.c.l.b16 %v339
        %v539 = vunpack.c.h.b16 %v339
        %v540 = vunpack.c.l.b16 %v340
        %v541 = vunpack.c.l.b16 %v341
        %v542 = vunpack.c.h.b16 %v341
        %v543 = vunpack.c.l.b16 %v342
        %v544 = vunpack.c.l.b16 %v343
        %v545 = vunpack.c.h.b16 %v343
        %v546 = vunpack.c.l.b16 %v344
        %v547 = vunpack.c.l.b16 %v345
        %v548 = vunpack.c.h.b16 %v345
        %v549 = vunpack.c.l.b16 %v346
        %v550 = vunpack.c.l.b16 %v347
        %v551 = vunpack.c.h.b16 %v347
        %v552 = vunpack.c.l.b16 %v348
        %v553 = vunpack.c.l.b16 %v349
        %v554 = vunpack.c.h.b16 %v349
        %v555 = vunpack.c.l.b16 %v350
        %v556 = vunpack.c.l.b16 %v351
        %v557 = vunpack.c.h.b16 %v351
        %v558 = vunpack.c.l.b16 %v352
        %v559 = vunpack.c.l.b16 %v353
        %v560 = vunpack.c.h.b16 %v353
        %v561 = vunpack.c.l.b16 %v354
        %v562 = vunpack.c.l.b16 %v355
        %v563 = vunpack.c.h.b16 %v355
        %v564 = vunpack.c.l.b16 %v356
        %v565 = vunpack.c.l.b16 %v357
        %v566 = vunpack.c.h.b16 %v357
        %v567 = vunpack.c.l.b16 %v358
        %v568 = vunpack.c.l.b16 %v359
        %v569 = vunpack.c.h.b16 %v359
        %v570 = vunpack.c.l.b16 %v360
        %v571 = vunpack.c.l.b16 %v361
        %v572 = vunpack.c.h.b16 %v361
        %v573 = vunpack.c.l.b16 %v362
        %v574 = vunpack.c.l.b16 %v363
        %v575 = vunpack.c.h.b16 %v363
        %v576 = vunpack.c.l.b16 %v364
        %v577 = vunpack.c.l.b16 %v365
        %v578 = vunpack.c.h.b16 %v365
        %v579 = vunpack.c.l.b16 %v366
        %v580 = vunpack.c.l.b16 %v367
        %v581 = vunpack.c.h.b16 %v367
        %v582 = vunpack.c.l.b16 %v368
        %v583 = vunpack.c.l.b16 %v369
        %v584 = vunpack.c.h.b16 %v369
        %v585 = vunpack.c.l.b16 %v370
        %v586 = vunpack.c.l.b16 %v371
        %v587 = vunpack.c.h.b16 %v371
        %v588 = vunpack.c.l.b16 %v372
        %v589 = vunpack.c.l.b16 %v373
        %v590 = vunpack.c.h.b16 %v373
        %v591 = vunpack.c.l.b16 %v374
        %v592 = vunpack.c.l.b16 %v375
        %v593 = vunpack.c.h.b16 %v375
        %v594 = vunpack.c.l.b16 %v376
        %v595 = vunpack.c.l.b16 %v377
        %v596 = vunpack.c.h.b16 %v377
        %v597 = vunpack.c.l.b16 %v378
        %v598 = vunpack.c.l.b16 %v379
        %v599 = vunpack.c.h.b16 %v379
        %v600 = vunpack.c.l.b16 %v380
        %v601 = vunpack.c.l.b16 %v381
        %v602 = vunpack.c.h.b16 %v381
        %v603 = vunpack.c.l.b16 %v382
        %v604 = vunpack.c.l.b16 %v383
        %v605 = vunpack.c.h.b16 %v383
        %v606 = vunpack.c.l.b16 %v384
        %v607 = vunpack.c.l.b16 %v385
        %v608 = vunpack.c.h.b16 %v385
        %v609 = vunpack.c.l.b16 %v386
        %v610 = vunpack.c.l.b16 %v387
        %v611 = vunpack.c.h.b16 %v387
        %v612 = vunpack.c.l.b16 %v388
        %v613 = vunpack.c.l.b16 %v389
        %v614 = vunpack.c.h.b16 %v389
        %v615 = vunpack.c.l.b16 %v390
        %v616 = vunpack.c.l.b16 %v391
        %v617 = vunpack.c.h.b16 %v391
        %v618 = vunpack.c.l.b16 %v392
        %v619 = vunpack.c.l.b16 %v393
        %v620 = vunpack.c.h.b16 %v393
        %v621 = vunpack.c.l.b16 %v394
        %v622 = vunpack.c.l.b16 %v395
        %v623 = vunpack.c.h.b16 %v395
        %v624 = vunpack.c.l.b16 %v396
        %v625 = vunpack.c.l.b16 %v397
        %v626 = vunpack.c.h.b16 %v397
        %v627 = vunpack.c.l.b16 %v398
        %v628 = vunpack.c.l.b16 %v399
        %v629 = vunpack.c.h.b16 %v399
        %v630 = vunpack.c.l.b16 %v400
        %v631 = vunpack.c.l.b16 %v401
        %v632 = vunpack.c.h.b16 %v401
        %v633 = vunpack.c.l.b16 %v402
        %v634 = vunpack.c.l.b16 %v403
        %v635 = vunpack.c.h.b16 %v403
        %v636 = vunpack.c.l.b16 %v404
        %v637 = vunpack.c.l.b16 %v405
        %v638 = vunpack.c.h.b16 %v405
        %v639 = vunpack.c.l.b16 %v406
        %v640 = vunpack.c.l.b16 %v407
        %v641 = vunpack.c.h.b16 %v407
        %v642 = vunpack.c.l.b16 %v408
        %v643 = vunpack.c.l.b16 %v409
        %v644 = vunpack.c.h.b16 %v409
        %v645 = vunpack.c.l.b16 %v410
        %v646 = vunpack.c.l.b16 %v411
        %v647 = vunpack.c.h.b16 %v411
        %v648 = vunpack.c.l.b16 %v412
        %v649 = vunpack.c.l.b16 %v413
        %v650 = vunpack.c.h.b16 %v413
        %v651 = vunpack.c.l.b16 %v414
        %v652 = vunpack.c.l.b16 %v415
        %v653 = vunpack.c.h.b16 %v415
        %v654 = vunpack.c.l.b16 %v416
        %v655 = vunpack.c.l.b16 %v417
        %v656 = vunpack.c.h.b16 %v417
        %v657 = vunpack.c.l.b16 %v418
        %v658 = vunpack.c.l.b16 %v419
        %v659 = vunpack.c.h.b16 %v419
        %v660 = vunpack.c.l.b16 %v420
        %v661 = vpack.c.b16 %v520, %v517
        %v662 = vpack.c.b16 %v521, %v518
        %v663 = vpack.c.b16 %v522, %v519
        %v664 = vpack.c.b16 %v526, %v523
        %v665 = vpack.c.b16 %v527, %v524
        %v666 = vpack.c.b16 %v528, %v525
        %v667 = vpack.c.b16 %v532, %v529
        %v668 = vpack.c.b16 %v533, %v530
        %v669 = vpack.c.b16 %v534, %v531
        %v670 = vpack.c.b16 %v538, %v535
        %v671 = vpack.c.b16 %v539, %v536
        %v672 = vpack.c.b16 %v540, %v537
        %v673 = vpack.c.b16 %v544, %v541
        %v674 = vpack.c.b16 %v545, %v542
        %v675 = vpack.c.b16 %v546, %v543
        %v676 = vpack.c.b16 %v550, %v547
        %v677 = vpack.c.b16 %v551, %v548
        %v678 = vpack.c.b16 %v552, %v549
        %v679 = vpack.c.b16 %v556, %v553
        %v680 = vpack.c.b16 %v557, %v554
        %v681 = vpack.c.b16 %v558, %v555
        %v682 = vpack.c.b16 %v562, %v559
        %v683 = vpack.c.b16 %v563, %v560
        %v684 = vpack.c.b16 %v564, %v561
        %v685 = vpack.c.b16 %v568, %v565
        %v686 = vpack.c.b16 %v569, %v566
        %v687 = vpack.c.b16 %v570, %v567
        %v688 = vpack.c.b16 %v574, %v571
        %v689 = vpack.c.b16 %v575, %v572
        %v690 = vpack.c.b16 %v576, %v573
        %v691 = vpack.c.b16 %v580, %v577
        %v692 = vpack.c.b16 %v581, %v578
        %v693 = vpack.c.b16 %v582, %v579
        %v694 = vpack.c.b16 %v586, %v583
        %v695 = vpack.c.b16 %v587, %v584
        %v696 = vpack.c.b16 %v588, %v585
        %v697 = vpack.c.b16 %v592, %v589
        %v698 = vpack.c.b16 %v593, %v590
        %v699 = vpack.c.b16 %v594, %v591
        %v700 = vpack.c.b16 %v598, %v595
        %v701 = vpack.c.b16 %v599, %v596
        %v702 = vpack.c.b16 %v600, %v597
        %v703 = vpack.c.b16 %v604, %v601
        %v704 = vpack.c.b16 %v605, %v602
        %v705 = vpack.c.b16 %v606, %v603
        %v706 = vpack.c.b16 %v610, %v607
        %v707 = vpack.c.b16 %v611, %v608
        %v708 = vpack.c.b16 %v612, %v609
        %v709 = vpack.c.b16 %v616, %v613
        %v710 = vpack.c.b16 %v617, %v614
        %v711 = vpack.c.b16 %v618, %v615
        %v712 = vpack.c.b16 %v622, %v619
        %v713 = vpack.c.b16 %v623, %v620
        %v714 = vpack.c.b16 %v624, %v621
        %v715 = vpack.c.b16 %v628, %v625
        %v716 = vpack.c.b16 %v629, %v626
        %v717 = vpack.c.b16 %v630, %v627
        %v718 = vpack.c.b16 %v634, %v631
        %v719 = vpack.c.b16 %v635, %v632
        %v720 = vpack.c.b16 %v636, %v633
        %v721 = vpack.c.b16 %v640, %v637
        %v722 = vpack.c.b16 %v641, %v638
        %v723 = vpack.c.b16 %v642, %v639
        %v724 = vpack.c.b16 %v646, %v643
        %v725 = vpack.c.b16 %v647, %v644
        %v726 = vpack.c.b16 %v648, %v645
        %v727 = vpack.c.b16 %v652, %v649
        %v728 = vpack.c.b16 %v653, %v650
        %v729 = vpack.c.b16 %v654, %v651
        %v730 = vpack.c.b16 %v658, %v655
        %v731 = vpack.c.b16 %v659, %v656
        %v732 = vpack.c.b16 %v660, %v657
        %805 = vmatprep.subr.bf16.mxu0 %v662
        %806 = vmatpush1.bf16.msra.mxu0 %v661
        %807 = vmatprep.subr.bf16.mxu0 %v665
        %808 = vmatpush1.bf16.msra.mxu0 %v664
        %809 = vmatprep.subr.bf16.mxu0 %v668
        %810 = vmatpush1.bf16.msra.mxu0 %v667
        %811 = vmatprep.subr.bf16.mxu0 %v671
        %812 = vmatpush1.bf16.msra.mxu0 %v670
        %813 = vmatprep.subr.bf16.mxu0 %v674
        %814 = vmatpush1.bf16.msra.mxu0 %v673
        %815 = vmatprep.subr.bf16.mxu0 %v677
        %816 = vmatpush1.bf16.msra.mxu0 %v676
        %817 = vmatprep.subr.bf16.mxu0 %v680
        %818 = vmatpush1.bf16.msra.mxu0 %v679
        %819 = vmatprep.subr.bf16.mxu0 %v683
        %820 = vmatpush1.bf16.msra.mxu0 %v682
        %821 = vmatprep.subr.bf16.mxu0 %v686
        %822 = vmatpush1.bf16.msra.mxu0 %v685
        %823 = vmatprep.subr.bf16.mxu0 %v689
        %824 = vmatpush1.bf16.msra.mxu0 %v688
        %825 = vmatprep.subr.bf16.mxu0 %v692
        %826 = vmatpush1.bf16.msra.mxu0 %v691
        %827 = vmatprep.subr.bf16.mxu0 %v695
        %828 = vmatpush1.bf16.msra.mxu0 %v694
        %829 = vmatprep.subr.bf16.mxu0 %v698
        %830 = vmatpush1.bf16.msra.mxu0 %v697
        %831 = vmatprep.subr.bf16.mxu0 %v701
        %832 = vmatpush1.bf16.msra.mxu0 %v700
        %833 = vmatprep.subr.bf16.mxu0 %v704
        %834 = vmatpush1.bf16.msra.mxu0 %v703
        %835 = vmatprep.subr.bf16.mxu0 %v707
        %836 = vmatpush1.bf16.msra.mxu0 %v706
        %837 = vmatprep.mubr.bf16.mxu0 %v278
        %838 = vmatmul.mubr.bf16.gmra.mrb[0].mxu0 %v277
        %v839 = vpop.f32.mrb[0].mxu0
        %v840 = vadd.f32 0.0, %v839
        %v841 = vpop.f32.mrb[0].mxu0
        %v842 = vadd.f32 0.0, %v841
        %v843 = vpop.f32.mrb[0].mxu0
        %v844 = vadd.f32 0.0, %v843
        %v845 = vpop.f32.mrb[0].mxu0
        %v846 = vadd.f32 0.0, %v845
        %847 = vmatprep.mubr.bf16.mxu0 %v281
        %848 = vmatmul.mubr.bf16.gmra.mrb[0].mxu0 %v280
        %v849 = vpop.f32.mrb[0].mxu0
        %v850 = vadd.f32 0.0, %v849
        %v851 = vpop.f32.mrb[0].mxu0
        %v852 = vadd.f32 0.0, %v851
        %v853 = vpop.f32.mrb[0].mxu0
        %v854 = vadd.f32 0.0, %v853
        %v855 = vpop.f32.mrb[0].mxu0
        %v856 = vadd.f32 0.0, %v855
        %857 = vmatprep.mubr.bf16.mxu0 %v284
        %858 = vmatmul.mubr.bf16.gmra.mrb[0].mxu0 %v283
        %v859 = vpop.f32.mrb[0].mxu0
        %v860 = vadd.f32 0.0, %v859
        %v861 = vpop.f32.mrb[0].mxu0
        %v862 = vadd.f32 0.0, %v861
        %v863 = vpop.f32.mrb[0].mxu0
        %v864 = vadd.f32 0.0, %v863
        %v865 = vpop.f32.mrb[0].mxu0
        %v866 = vadd.f32 0.0, %v865
        %867 = vmatprep.mubr.bf16.mxu0 %v287
        %868 = vmatmul.mubr.bf16.gmra.mrb[0].mxu0 %v286
        %v869 = vpop.f32.mrb[0].mxu0
        %v870 = vadd.f32 0.0, %v869
        %v871 = vpop.f32.mrb[0].mxu0
        %v872 = vadd.f32 0.0, %v871
        %v873 = vpop.f32.mrb[0].mxu0
        %v874 = vadd.f32 0.0, %v873
        %v875 = vpop.f32.mrb[0].mxu0
        %v876 = vadd.f32 0.0, %v875
        %877 = vmatprep.mubr.bf16.mxu0 %v290
        %878 = vmatmul.mubr.bf16.gmra.mrb[0].mxu0 %v289
        %v879 = vpop.f32.mrb[0].mxu0
        %v880 = vadd.f32 0.0, %v879
        %v881 = vpop.f32.mrb[0].mxu0
        %v882 = vadd.f32 0.0, %v881
        %v883 = vpop.f32.mrb[0].mxu0
        %v884 = vadd.f32 0.0, %v883
        %v885 = vpop.f32.mrb[0].mxu0
        %v886 = vadd.f32 0.0, %v885
        %887 = vmatprep.mubr.bf16.mxu0 %v293
        %888 = vmatmul.mubr.bf16.gmra.mrb[0].mxu0 %v292
        %v889 = vpop.f32.mrb[0].mxu0
        %v890 = vadd.f32 0.0, %v889
        %v891 = vpop.f32.mrb[0].mxu0
        %v892 = vadd.f32 0.0, %v891
        %v893 = vpop.f32.mrb[0].mxu0
        %v894 = vadd.f32 0.0, %v893
        %v895 = vpop.f32.mrb[0].mxu0
        %v896 = vadd.f32 0.0, %v895
        %897 = vmatprep.mubr.bf16.mxu0 %v296
        %898 = vmatmul.mubr.bf16.gmra.mrb[0].mxu0 %v295
        %v899 = vpop.f32.mrb[0].mxu0
        %v900 = vadd.f32 0.0, %v899
        %v901 = vpop.f32.mrb[0].mxu0
        %v902 = vadd.f32 0.0, %v901
        %v903 = vpop.f32.mrb[0].mxu0
        %v904 = vadd.f32 0.0, %v903
        %v905 = vpop.f32.mrb[0].mxu0
        %v906 = vadd.f32 0.0, %v905
        %907 = vmatprep.mubr.bf16.mxu0 %v299
        %908 = vmatmul.mubr.bf16.gmra.mrb[0].mxu0 %v298
        %v909 = vpop.f32.mrb[0].mxu0
        %v910 = vadd.f32 0.0, %v909
        %v911 = vpop.f32.mrb[0].mxu0
        %v912 = vadd.f32 0.0, %v911
        %v913 = vpop.f32.mrb[0].mxu0
        %v914 = vadd.f32 0.0, %v913
        %v915 = vpop.f32.mrb[0].mxu0
        %v916 = vadd.f32 0.0, %v915
        %917 = vmatprep.mubr.bf16.mxu0 %v302
        %918 = vmatmul.mubr.bf16.gmra.mrb[0].mxu0 %v301
        %v919 = vpop.f32.mrb[0].mxu0
        %v920 = vadd.f32 0.0, %v919
        %v921 = vpop.f32.mrb[0].mxu0
        %v922 = vadd.f32 0.0, %v921
        %v923 = vpop.f32.mrb[0].mxu0
        %v924 = vadd.f32 0.0, %v923
        %v925 = vpop.f32.mrb[0].mxu0
        %v926 = vadd.f32 0.0, %v925
        %927 = vmatprep.mubr.bf16.mxu0 %v305
        %928 = vmatmul.mubr.bf16.gmra.mrb[0].mxu0 %v304
        %v929 = vpop.f32.mrb[0].mxu0
        %v930 = vadd.f32 0.0, %v929
        %v931 = vpop.f32.mrb[0].mxu0
        %v932 = vadd.f32 0.0, %v931
        %v933 = vpop.f32.mrb[0].mxu0
        %v934 = vadd.f32 0.0, %v933
        %v935 = vpop.f32.mrb[0].mxu0
        %v936 = vadd.f32 0.0, %v935
        %937 = vmatprep.mubr.bf16.mxu0 %v308
        %938 = vmatmul.mubr.bf16.gmra.mrb[0].mxu0 %v307
        %v939 = vpop.f32.mrb[0].mxu0
        %v940 = vadd.f32 0.0, %v939
        %v941 = vpop.f32.mrb[0].mxu0
        %v942 = vadd.f32 0.0, %v941
        %v943 = vpop.f32.mrb[0].mxu0
        %v944 = vadd.f32 0.0, %v943
        %v945 = vpop.f32.mrb[0].mxu0
        %v946 = vadd.f32 0.0, %v945
        %947 = vmatprep.mubr.bf16.mxu0 %v311
        %948 = vmatmul.mubr.bf16.gmra.mrb[0].mxu0 %v310
        %v949 = vpop.f32.mrb[0].mxu0
        %v950 = vadd.f32 0.0, %v949
        %v951 = vpop.f32.mrb[0].mxu0
        %v952 = vadd.f32 0.0, %v951
        %v953 = vpop.f32.mrb[0].mxu0
        %v954 = vadd.f32 0.0, %v953
        %v955 = vpop.f32.mrb[0].mxu0
        %v956 = vadd.f32 0.0, %v955
        %957 = vmatprep.mubr.bf16.mxu0 %v314
        %958 = vmatmul.mubr.bf16.gmra.mrb[0].mxu0 %v313
        %v959 = vpop.f32.mrb[0].mxu0
        %v960 = vadd.f32 0.0, %v959
        %v961 = vpop.f32.mrb[0].mxu0
        %v962 = vadd.f32 0.0, %v961
        %v963 = vpop.f32.mrb[0].mxu0
        %v964 = vadd.f32 0.0, %v963
        %v965 = vpop.f32.mrb[0].mxu0
        %v966 = vadd.f32 0.0, %v965
        %967 = vmatprep.mubr.bf16.mxu0 %v317
        %968 = vmatmul.mubr.bf16.gmra.mrb[0].mxu0 %v316
        %v969 = vpop.f32.mrb[0].mxu0
        %v970 = vadd.f32 0.0, %v969
        %v971 = vpop.f32.mrb[0].mxu0
        %v972 = vadd.f32 0.0, %v971
        %v973 = vpop.f32.mrb[0].mxu0
        %v974 = vadd.f32 0.0, %v973
        %v975 = vpop.f32.mrb[0].mxu0
        %v976 = vadd.f32 0.0, %v975
        %977 = vmatprep.mubr.bf16.mxu0 %v320
        %978 = vmatmul.mubr.bf16.gmra.mrb[0].mxu0 %v319
        %v979 = vpop.f32.mrb[0].mxu0
        %v980 = vadd.f32 0.0, %v979
        %v981 = vpop.f32.mrb[0].mxu0
        %v982 = vadd.f32 0.0, %v981
        %v983 = vpop.f32.mrb[0].mxu0
        %v984 = vadd.f32 0.0, %v983
        %v985 = vpop.f32.mrb[0].mxu0
        %v986 = vadd.f32 0.0, %v985
        %987 = vmatprep.mubr.bf16.mxu0 %v323
        %988 = vmatmul.mubr.bf16.gmra.mrb[0].mxu0 %v322
        %v989 = vpop.f32.mrb[0].mxu0
        %v990 = vadd.f32 0.0, %v989
        %v991 = vpop.f32.mrb[0].mxu0
        %v992 = vadd.f32 0.0, %v991
        %v993 = vpop.f32.mrb[0].mxu0
        %v994 = vadd.f32 0.0, %v993
        %v995 = vpop.f32.mrb[0].mxu0
        %v996 = vadd.f32 0.0, %v995
        %997 = vdwg.mxu0
        %998 = vmatprep.subr.bf16.mxu0 %v710
        %999 = vmatpush1.bf16.msra.mxu0 %v709
        %1000 = vmatprep.subr.bf16.mxu0 %v713
        %1001 = vmatpush1.bf16.msra.mxu0 %v712
        %1002 = vmatprep.subr.bf16.mxu0 %v716
        %1003 = vmatpush1.bf16.msra.mxu0 %v715
        %1004 = vmatprep.subr.bf16.mxu0 %v719
        %1005 = vmatpush1.bf16.msra.mxu0 %v718
        %1006 = vmatprep.subr.bf16.mxu0 %v722
        %1007 = vmatpush1.bf16.msra.mxu0 %v721
        %1008 = vmatprep.subr.bf16.mxu0 %v725
        %1009 = vmatpush1.bf16.msra.mxu0 %v724
        %1010 = vmatprep.subr.bf16.mxu0 %v728
        %1011 = vmatpush1.bf16.msra.mxu0 %v727
        %1012 = vmatprep.subr.bf16.mxu0 %v731
        %1013 = vmatpush1.bf16.msra.mxu0 %v730
        %1014 = vmatprep.subr.bf16.mxu0 0
        %1015 = vmatpush1.bf16.msra.mxu0 0
        %1016 = vmatprep.subr.bf16.mxu0 0
        %1017 = vmatpush1.bf16.msra.mxu0 0
        %1018 = vmatprep.subr.bf16.mxu0 0
        %1019 = vmatpush1.bf16.msra.mxu0 0
        %1020 = vmatprep.subr.bf16.mxu0 0
        %1021 = vmatpush1.bf16.msra.mxu0 0
        %1022 = vmatprep.subr.bf16.mxu0 0
        %1023 = vmatpush1.bf16.msra.mxu0 0
        %1024 = vmatprep.subr.bf16.mxu0 0
        %1025 = vmatpush1.bf16.msra.mxu0 0
        %1026 = vmatprep.subr.bf16.mxu0 0
        %1027 = vmatpush1.bf16.msra.mxu0 0
        %1028 = vmatprep.subr.bf16.mxu0 0
        %1029 = vmatpush1.bf16.msra.mxu0 0
        %1030 = vmatprep.mubr.bf16.mxu0 0
        %1031 = vmatmul.mubr.bf16.gmra.mrb[0].mxu0 %v279
        %v1032 = vpop.f32.mrb[0].mxu0
        %v1033 = vadd.f32 %v840, %v1032
        %v1034 = vpop.f32.mrb[0].mxu0
        %v1035 = vadd.f32 %v842, %v1034
        %v1036 = vpop.f32.mrb[0].mxu0
        %v1037 = vadd.f32 %v844, %v1036
        %v1038 = vpop.f32.mrb[0].mxu0
        %v1039 = vadd.f32 %v846, %v1038
        %1040 = vmatprep.mubr.bf16.mxu0 0
        %1041 = vmatmul.mubr.bf16.gmra.mrb[0].mxu0 %v282
        %v1042 = vpop.f32.mrb[0].mxu0
        %v1043 = vadd.f32 %v850, %v1042
        %v1044 = vpop.f32.mrb[0].mxu0
        %v1045 = vadd.f32 %v852, %v1044
        %v1046 = vpop.f32.mrb[0].mxu0
        %v1047 = vadd.f32 %v854, %v1046
        %v1048 = vpop.f32.mrb[0].mxu0
        %v1049 = vadd.f32 %v856, %v1048
        %1050 = vmatprep.mubr.bf16.mxu0 0
        %1051 = vmatmul.mubr.bf16.gmra.mrb[0].mxu0 %v285
        %v1052 = vpop.f32.mrb[0].mxu0
        %v1053 = vadd.f32 %v860, %v1052
        %v1054 = vpop.f32.mrb[0].mxu0
        %v1055 = vadd.f32 %v862, %v1054
        %v1056 = vpop.f32.mrb[0].mxu0
        %v1057 = vadd.f32 %v864, %v1056
        %v1058 = vpop.f32.mrb[0].mxu0
        %v1059 = vadd.f32 %v866, %v1058
        %1060 = vmatprep.mubr.bf16.mxu0 0
        %1061 = vmatmul.mubr.bf16.gmra.mrb[0].mxu0 %v288
        %v1062 = vpop.f32.mrb[0].mxu0
        %v1063 = vadd.f32 %v870, %v1062
        %v1064 = vpop.f32.mrb[0].mxu0
        %v1065 = vadd.f32 %v872, %v1064
        %v1066 = vpop.f32.mrb[0].mxu0
        %v1067 = vadd.f32 %v874, %v1066
        %v1068 = vpop.f32.mrb[0].mxu0
        %v1069 = vadd.f32 %v876, %v1068
        %1070 = vmatprep.mubr.bf16.mxu0 0
        %1071 = vmatmul.mubr.bf16.gmra.mrb[0].mxu0 %v291
        %v1072 = vpop.f32.mrb[0].mxu0
        %v1073 = vadd.f32 %v880, %v1072
        %v1074 = vpop.f32.mrb[0].mxu0
        %v1075 = vadd.f32 %v882, %v1074
        %v1076 = vpop.f32.mrb[0].mxu0
        %v1077 = vadd.f32 %v884, %v1076
        %v1078 = vpop.f32.mrb[0].mxu0
        %v1079 = vadd.f32 %v886, %v1078
        %1080 = vmatprep.mubr.bf16.mxu0 0
        %1081 = vmatmul.mubr.bf16.gmra.mrb[0].mxu0 %v294
        %v1082 = vpop.f32.mrb[0].mxu0
        %v1083 = vadd.f32 %v890, %v1082
        %v1084 = vpop.f32.mrb[0].mxu0
        %v1085 = vadd.f32 %v892, %v1084
        %v1086 = vpop.f32.mrb[0].mxu0
        %v1087 = vadd.f32 %v894, %v1086
        %v1088 = vpop.f32.mrb[0].mxu0
        %v1089 = vadd.f32 %v896, %v1088
        %1090 = vmatprep.mubr.bf16.mxu0 0
        %1091 = vmatmul.mubr.bf16.gmra.mrb[0].mxu0 %v297
        %v1092 = vpop.f32.mrb[0].mxu0
        %v1093 = vadd.f32 %v900, %v1092
        %v1094 = vpop.f32.mrb[0].mxu0
        %v1095 = vadd.f32 %v902, %v1094
        %v1096 = vpop.f32.mrb[0].mxu0
        %v1097 = vadd.f32 %v904, %v1096
        %v1098 = vpop.f32.mrb[0].mxu0
        %v1099 = vadd.f32 %v906, %v1098
        %1100 = vmatprep.mubr.bf16.mxu0 0
        %1101 = vmatmul.mubr.bf16.gmra.mrb[0].mxu0 %v300
        %v1102 = vpop.f32.mrb[0].mxu0
        %v1103 = vadd.f32 %v910, %v1102
        %v1104 = vpop.f32.mrb[0].mxu0
        %v1105 = vadd.f32 %v912, %v1104
        %v1106 = vpop.f32.mrb[0].mxu0
        %v1107 = vadd.f32 %v914, %v1106
        %v1108 = vpop.f32.mrb[0].mxu0
        %v1109 = vadd.f32 %v916, %v1108
        %1110 = vmatprep.mubr.bf16.mxu0 0
        %1111 = vmatmul.mubr.bf16.gmra.mrb[0].mxu0 %v303
        %v1112 = vpop.f32.mrb[0].mxu0
        %v1113 = vadd.f32 %v920, %v1112
        %v1114 = vpop.f32.mrb[0].mxu0
        %v1115 = vadd.f32 %v922, %v1114
        %v1116 = vpop.f32.mrb[0].mxu0
        %v1117 = vadd.f32 %v924, %v1116
        %v1118 = vpop.f32.mrb[0].mxu0
        %v1119 = vadd.f32 %v926, %v1118
        %1120 = vmatprep.mubr.bf16.mxu0 0
        %1121 = vmatmul.mubr.bf16.gmra.mrb[0].mxu0 %v306
        %v1122 = vpop.f32.mrb[0].mxu0
        %v1123 = vadd.f32 %v930, %v1122
        %v1124 = vpop.f32.mrb[0].mxu0
        %v1125 = vadd.f32 %v932, %v1124
        %v1126 = vpop.f32.mrb[0].mxu0
        %v1127 = vadd.f32 %v934, %v1126
        %v1128 = vpop.f32.mrb[0].mxu0
        %v1129 = vadd.f32 %v936, %v1128
        %1130 = vmatprep.mubr.bf16.mxu0 0
        %1131 = vmatmul.mubr.bf16.gmra.mrb[0].mxu0 %v309
        %v1132 = vpop.f32.mrb[0].mxu0
        %v1133 = vadd.f32 %v940, %v1132
        %v1134 = vpop.f32.mrb[0].mxu0
        %v1135 = vadd.f32 %v942, %v1134
        %v1136 = vpop.f32.mrb[0].mxu0
        %v1137 = vadd.f32 %v944, %v1136
        %v1138 = vpop.f32.mrb[0].mxu0
        %v1139 = vadd.f32 %v946, %v1138
        %1140 = vmatprep.mubr.bf16.mxu0 0
        %1141 = vmatmul.mubr.bf16.gmra.mrb[0].mxu0 %v312
        %v1142 = vpop.f32.mrb[0].mxu0
        %v1143 = vadd.f32 %v950, %v1142
        %v1144 = vpop.f32.mrb[0].mxu0
        %v1145 = vadd.f32 %v952, %v1144
        %v1146 = vpop.f32.mrb[0].mxu0
        %v1147 = vadd.f32 %v954, %v1146
        %v1148 = vpop.f32.mrb[0].mxu0
        %v1149 = vadd.f32 %v956, %v1148
        %1150 = vmatprep.mubr.bf16.mxu0 0
        %1151 = vmatmul.mubr.bf16.gmra.mrb[0].mxu0 %v315
        %v1152 = vpop.f32.mrb[0].mxu0
        %v1153 = vadd.f32 %v960, %v1152
        %v1154 = vpop.f32.mrb[0].mxu0
        %v1155 = vadd.f32 %v962, %v1154
        %v1156 = vpop.f32.mrb[0].mxu0
        %v1157 = vadd.f32 %v964, %v1156
        %v1158 = vpop.f32.mrb[0].mxu0
        %v1159 = vadd.f32 %v966, %v1158
        %1160 = vmatprep.mubr.bf16.mxu0 0
        %1161 = vmatmul.mubr.bf16.gmra.mrb[0].mxu0 %v318
        %v1162 = vpop.f32.mrb[0].mxu0
        %v1163 = vadd.f32 %v970, %v1162
        %v1164 = vpop.f32.mrb[0].mxu0
        %v1165 = vadd.f32 %v972, %v1164
        %v1166 = vpop.f32.mrb[0].mxu0
        %v1167 = vadd.f32 %v974, %v1166
        %v1168 = vpop.f32.mrb[0].mxu0
        %v1169 = vadd.f32 %v976, %v1168
        %1170 = vmatprep.mubr.bf16.mxu0 0
        %1171 = vmatmul.mubr.bf16.gmra.mrb[0].mxu0 %v321
        %v1172 = vpop.f32.mrb[0].mxu0
        %v1173 = vadd.f32 %v980, %v1172
        %v1174 = vpop.f32.mrb[0].mxu0
        %v1175 = vadd.f32 %v982, %v1174
        %v1176 = vpop.f32.mrb[0].mxu0
        %v1177 = vadd.f32 %v984, %v1176
        %v1178 = vpop.f32.mrb[0].mxu0
        %v1179 = vadd.f32 %v986, %v1178
        %1180 = vmatprep.mubr.bf16.mxu0 0
        %1181 = vmatmul.mubr.bf16.gmra.mrb[0].mxu0 %v324
        %v1182 = vpop.f32.mrb[0].mxu0
        %v1183 = vadd.f32 %v990, %v1182
        %v1184 = vpop.f32.mrb[0].mxu0
        %v1185 = vadd.f32 %v992, %v1184
        %v1186 = vpop.f32.mrb[0].mxu0
        %v1187 = vadd.f32 %v994, %v1186
        %v1188 = vpop.f32.mrb[0].mxu0
        %v1189 = vadd.f32 %v996, %v1188
        %1190 = vdwg.mxu0
        %1191 = vmatprep.subr.bf16.mxu0 0
        %1192 = vmatpush1.bf16.msra.mxu0 %v663
        %1193 = vmatprep.subr.bf16.mxu0 0
        %1194 = vmatpush1.bf16.msra.mxu0 %v666
        %1195 = vmatprep.subr.bf16.mxu0 0
        %1196 = vmatpush1.bf16.msra.mxu0 %v669
        %1197 = vmatprep.subr.bf16.mxu0 0
        %1198 = vmatpush1.bf16.msra.mxu0 %v672
        %1199 = vmatprep.subr.bf16.mxu0 0
        %1200 = vmatpush1.bf16.msra.mxu0 %v675
        %1201 = vmatprep.subr.bf16.mxu0 0
        %1202 = vmatpush1.bf16.msra.mxu0 %v678
        %1203 = vmatprep.subr.bf16.mxu0 0
        %1204 = vmatpush1.bf16.msra.mxu0 %v681
        %1205 = vmatprep.subr.bf16.mxu0 0
        %1206 = vmatpush1.bf16.msra.mxu0 %v684
        %1207 = vmatprep.subr.bf16.mxu0 0
        %1208 = vmatpush1.bf16.msra.mxu0 %v687
        %1209 = vmatprep.subr.bf16.mxu0 0
        %1210 = vmatpush1.bf16.msra.mxu0 %v690
        %1211 = vmatprep.subr.bf16.mxu0 0
        %1212 = vmatpush1.bf16.msra.mxu0 %v693
        %1213 = vmatprep.subr.bf16.mxu0 0
        %1214 = vmatpush1.bf16.msra.mxu0 %v696
        %1215 = vmatprep.subr.bf16.mxu0 0
        %1216 = vmatpush1.bf16.msra.mxu0 %v699
        %1217 = vmatprep.subr.bf16.mxu0 0
        %1218 = vmatpush1.bf16.msra.mxu0 %v702
        %1219 = vmatprep.subr.bf16.mxu0 0
        %1220 = vmatpush1.bf16.msra.mxu0 %v705
        %1221 = vmatprep.subr.bf16.mxu0 0
        %1222 = vmatpush1.bf16.msra.mxu0 %v708
        %1223 = vmatprep.mubr.bf16.mxu0 %v278
        %1224 = vmatmul.mubr.bf16.gmra.mrb[0].mxu0 %v277
        %v1225 = vpop.f32.mrb[0].mxu0
        %v1226 = vadd.f32 0.0, %v1225
        %v1227 = vpop.f32.mrb[0].mxu0
        %v1228 = vpop.f32.mrb[0].mxu0
        %v1229 = vadd.f32 0.0, %v1228
        %v1230 = vpop.f32.mrb[0].mxu0
        %1231 = vmatprep.mubr.bf16.mxu0 %v281
        %1232 = vmatmul.mubr.bf16.gmra.mrb[0].mxu0 %v280
        %v1233 = vpop.f32.mrb[0].mxu0
        %v1234 = vadd.f32 0.0, %v1233
        %v1235 = vpop.f32.mrb[0].mxu0
        %v1236 = vpop.f32.mrb[0].mxu0
        %v1237 = vadd.f32 0.0, %v1236
        %v1238 = vpop.f32.mrb[0].mxu0
        %1239 = vmatprep.mubr.bf16.mxu0 %v284
        %1240 = vmatmul.mubr.bf16.gmra.mrb[0].mxu0 %v283
        %v1241 = vpop.f32.mrb[0].mxu0
        %v1242 = vadd.f32 0.0, %v1241
        %v1243 = vpop.f32.mrb[0].mxu0
        %v1244 = vpop.f32.mrb[0].mxu0
        %v1245 = vadd.f32 0.0, %v1244
        %v1246 = vpop.f32.mrb[0].mxu0
        %1247 = vmatprep.mubr.bf16.mxu0 %v287
        %1248 = vmatmul.mubr.bf16.gmra.mrb[0].mxu0 %v286
        %v1249 = vpop.f32.mrb[0].mxu0
        %v1250 = vadd.f32 0.0, %v1249
        %v1251 = vpop.f32.mrb[0].mxu0
        %v1252 = vpop.f32.mrb[0].mxu0
        %v1253 = vadd.f32 0.0, %v1252
        %v1254 = vpop.f32.mrb[0].mxu0
        %1255 = vmatprep.mubr.bf16.mxu0 %v290
        %1256 = vmatmul.mubr.bf16.gmra.mrb[0].mxu0 %v289
        %v1257 = vpop.f32.mrb[0].mxu0
        %v1258 = vadd.f32 0.0, %v1257
        %v1259 = vpop.f32.mrb[0].mxu0
        %v1260 = vpop.f32.mrb[0].mxu0
        %v1261 = vadd.f32 0.0, %v1260
        %v1262 = vpop.f32.mrb[0].mxu0
        %1263 = vmatprep.mubr.bf16.mxu0 %v293
        %1264 = vmatmul.mubr.bf16.gmra.mrb[0].mxu0 %v292
        %v1265 = vpop.f32.mrb[0].mxu0
        %v1266 = vadd.f32 0.0, %v1265
        %v1267 = vpop.f32.mrb[0].mxu0
        %v1268 = vpop.f32.mrb[0].mxu0
        %v1269 = vadd.f32 0.0, %v1268
        %v1270 = vpop.f32.mrb[0].mxu0
        %1271 = vmatprep.mubr.bf16.mxu0 %v296
        %1272 = vmatmul.mubr.bf16.gmra.mrb[0].mxu0 %v295
        %v1273 = vpop.f32.mrb[0].mxu0
        %v1274 = vadd.f32 0.0, %v1273
        %v1275 = vpop.f32.mrb[0].mxu0
        %v1276 = vpop.f32.mrb[0].mxu0
        %v1277 = vadd.f32 0.0, %v1276
        %v1278 = vpop.f32.mrb[0].mxu0
        %1279 = vmatprep.mubr.bf16.mxu0 %v299
        %1280 = vmatmul.mubr.bf16.gmra.mrb[0].mxu0 %v298
        %v1281 = vpop.f32.mrb[0].mxu0
        %v1282 = vadd.f32 0.0, %v1281
        %v1283 = vpop.f32.mrb[0].mxu0
        %v1284 = vpop.f32.mrb[0].mxu0
        %v1285 = vadd.f32 0.0, %v1284
        %v1286 = vpop.f32.mrb[0].mxu0
        %1287 = vmatprep.mubr.bf16.mxu0 %v302
        %1288 = vmatmul.mubr.bf16.gmra.mrb[0].mxu0 %v301
        %v1289 = vpop.f32.mrb[0].mxu0
        %v1290 = vadd.f32 0.0, %v1289
        %v1291 = vpop.f32.mrb[0].mxu0
        %v1292 = vpop.f32.mrb[0].mxu0
        %v1293 = vadd.f32 0.0, %v1292
        %v1294 = vpop.f32.mrb[0].mxu0
        %1295 = vmatprep.mubr.bf16.mxu0 %v305
        %1296 = vmatmul.mubr.bf16.gmra.mrb[0].mxu0 %v304
        %v1297 = vpop.f32.mrb[0].mxu0
        %v1298 = vadd.f32 0.0, %v1297
        %v1299 = vpop.f32.mrb[0].mxu0
        %v1300 = vpop.f32.mrb[0].mxu0
        %v1301 = vadd.f32 0.0, %v1300
        %v1302 = vpop.f32.mrb[0].mxu0
        %1303 = vmatprep.mubr.bf16.mxu0 %v308
        %1304 = vmatmul.mubr.bf16.gmra.mrb[0].mxu0 %v307
        %v1305 = vpop.f32.mrb[0].mxu0
        %v1306 = vadd.f32 0.0, %v1305
        %v1307 = vpop.f32.mrb[0].mxu0
        %v1308 = vpop.f32.mrb[0].mxu0
        %v1309 = vadd.f32 0.0, %v1308
        %v1310 = vpop.f32.mrb[0].mxu0
        %1311 = vmatprep.mubr.bf16.mxu0 %v311
        %1312 = vmatmul.mubr.bf16.gmra.mrb[0].mxu0 %v310
        %v1313 = vpop.f32.mrb[0].mxu0
        %v1314 = vadd.f32 0.0, %v1313
        %v1315 = vpop.f32.mrb[0].mxu0
        %v1316 = vpop.f32.mrb[0].mxu0
        %v1317 = vadd.f32 0.0, %v1316
        %v1318 = vpop.f32.mrb[0].mxu0
        %1319 = vmatprep.mubr.bf16.mxu0 %v314
        %1320 = vmatmul.mubr.bf16.gmra.mrb[0].mxu0 %v313
        %v1321 = vpop.f32.mrb[0].mxu0
        %v1322 = vadd.f32 0.0, %v1321
        %v1323 = vpop.f32.mrb[0].mxu0
        %v1324 = vpop.f32.mrb[0].mxu0
        %v1325 = vadd.f32 0.0, %v1324
        %v1326 = vpop.f32.mrb[0].mxu0
        %1327 = vmatprep.mubr.bf16.mxu0 %v317
        %1328 = vmatmul.mubr.bf16.gmra.mrb[0].mxu0 %v316
        %v1329 = vpop.f32.mrb[0].mxu0
        %v1330 = vadd.f32 0.0, %v1329
        %v1331 = vpop.f32.mrb[0].mxu0
        %v1332 = vpop.f32.mrb[0].mxu0
        %v1333 = vadd.f32 0.0, %v1332
        %v1334 = vpop.f32.mrb[0].mxu0
        %1335 = vmatprep.mubr.bf16.mxu0 %v320
        %1336 = vmatmul.mubr.bf16.gmra.mrb[0].mxu0 %v319
        %v1337 = vpop.f32.mrb[0].mxu0
        %v1338 = vadd.f32 0.0, %v1337
        %v1339 = vpop.f32.mrb[0].mxu0
        %v1340 = vpop.f32.mrb[0].mxu0
        %v1341 = vadd.f32 0.0, %v1340
        %v1342 = vpop.f32.mrb[0].mxu0
        %1343 = vmatprep.mubr.bf16.mxu0 %v323
        %1344 = vmatmul.mubr.bf16.gmra.mrb[0].mxu0 %v322
        %v1345 = vpop.f32.mrb[0].mxu0
        %v1346 = vadd.f32 0.0, %v1345
        %v1347 = vpop.f32.mrb[0].mxu0
        %v1348 = vpop.f32.mrb[0].mxu0
        %v1349 = vadd.f32 0.0, %v1348
        %v1350 = vpop.f32.mrb[0].mxu0
        %1351 = vdwg.mxu0
        %1352 = vmatprep.subr.bf16.mxu0 0
        %1353 = vmatpush1.bf16.msra.mxu0 %v711
        %1354 = vmatprep.subr.bf16.mxu0 0
        %1355 = vmatpush1.bf16.msra.mxu0 %v714
        %1356 = vmatprep.subr.bf16.mxu0 0
        %1357 = vmatpush1.bf16.msra.mxu0 %v717
        %1358 = vmatprep.subr.bf16.mxu0 0
        %1359 = vmatpush1.bf16.msra.mxu0 %v720
        %1360 = vmatprep.subr.bf16.mxu0 0
        %1361 = vmatpush1.bf16.msra.mxu0 %v723
        %1362 = vmatprep.subr.bf16.mxu0 0
        %1363 = vmatpush1.bf16.msra.mxu0 %v726
        %1364 = vmatprep.subr.bf16.mxu0 0
        %1365 = vmatpush1.bf16.msra.mxu0 %v729
        %1366 = vmatprep.subr.bf16.mxu0 0
        %1367 = vmatpush1.bf16.msra.mxu0 %v732
        %1368 = vmatprep.subr.bf16.mxu0 0
        %1369 = vmatpush1.bf16.msra.mxu0 0
        %1370 = vmatprep.subr.bf16.mxu0 0
        %1371 = vmatpush1.bf16.msra.mxu0 0
        %1372 = vmatprep.subr.bf16.mxu0 0
        %1373 = vmatpush1.bf16.msra.mxu0 0
        %1374 = vmatprep.subr.bf16.mxu0 0
        %1375 = vmatpush1.bf16.msra.mxu0 0
        %1376 = vmatprep.subr.bf16.mxu0 0
        %1377 = vmatpush1.bf16.msra.mxu0 0
        %1378 = vmatprep.subr.bf16.mxu0 0
        %1379 = vmatpush1.bf16.msra.mxu0 0
        %1380 = vmatprep.subr.bf16.mxu0 0
        %1381 = vmatpush1.bf16.msra.mxu0 0
        %1382 = vmatprep.subr.bf16.mxu0 0
        %1383 = vmatpush1.bf16.msra.mxu0 0
        %1384 = vmatprep.mubr.bf16.mxu0 0
        %1385 = vmatmul.mubr.bf16.gmra.mrb[0].mxu0 %v279
        %v1386 = vpop.f32.mrb[0].mxu0
        %v1387 = vadd.f32 %v1226, %v1386
        %v1388 = vpop.f32.mrb[0].mxu0
        %v1389 = vpop.f32.mrb[0].mxu0
        %v1390 = vadd.f32 %v1229, %v1389
        %v1391 = vpop.f32.mrb[0].mxu0
        %1392 = vmatprep.mubr.bf16.mxu0 0
        %1393 = vmatmul.mubr.bf16.gmra.mrb[0].mxu0 %v282
        %v1394 = vpop.f32.mrb[0].mxu0
        %v1395 = vadd.f32 %v1234, %v1394
        %v1396 = vpop.f32.mrb[0].mxu0
        %v1397 = vpop.f32.mrb[0].mxu0
        %v1398 = vadd.f32 %v1237, %v1397
        %v1399 = vpop.f32.mrb[0].mxu0
        %1400 = vmatprep.mubr.bf16.mxu0 0
        %1401 = vmatmul.mubr.bf16.gmra.mrb[0].mxu0 %v285
        %v1402 = vpop.f32.mrb[0].mxu0
        %v1403 = vadd.f32 %v1242, %v1402
        %v1404 = vpop.f32.mrb[0].mxu0
        %v1405 = vpop.f32.mrb[0].mxu0
        %v1406 = vadd.f32 %v1245, %v1405
        %v1407 = vpop.f32.mrb[0].mxu0
        %1408 = vmatprep.mubr.bf16.mxu0 0
        %1409 = vmatmul.mubr.bf16.gmra.mrb[0].mxu0 %v288
        %v1410 = vpop.f32.mrb[0].mxu0
        %v1411 = vadd.f32 %v1250, %v1410
        %v1412 = vpop.f32.mrb[0].mxu0
        %v1413 = vpop.f32.mrb[0].mxu0
        %v1414 = vadd.f32 %v1253, %v1413
        %v1415 = vpop.f32.mrb[0].mxu0
        %1416 = vmatprep.mubr.bf16.mxu0 0
        %1417 = vmatmul.mubr.bf16.gmra.mrb[0].mxu0 %v291
        %v1418 = vpop.f32.mrb[0].mxu0
        %v1419 = vadd.f32 %v1258, %v1418
        %v1420 = vpop.f32.mrb[0].mxu0
        %v1421 = vpop.f32.mrb[0].mxu0
        %v1422 = vadd.f32 %v1261, %v1421
        %v1423 = vpop.f32.mrb[0].mxu0
        %1424 = vmatprep.mubr.bf16.mxu0 0
        %1425 = vmatmul.mubr.bf16.gmra.mrb[0].mxu0 %v294
        %v1426 = vpop.f32.mrb[0].mxu0
        %v1427 = vadd.f32 %v1266, %v1426
        %v1428 = vpop.f32.mrb[0].mxu0
        %v1429 = vpop.f32.mrb[0].mxu0
        %v1430 = vadd.f32 %v1269, %v1429
        %v1431 = vpop.f32.mrb[0].mxu0
        %1432 = vmatprep.mubr.bf16.mxu0 0
        %1433 = vmatmul.mubr.bf16.gmra.mrb[0].mxu0 %v297
        %v1434 = vpop.f32.mrb[0].mxu0
        %v1435 = vadd.f32 %v1274, %v1434
        %v1436 = vpop.f32.mrb[0].mxu0
        %v1437 = vpop.f32.mrb[0].mxu0
        %v1438 = vadd.f32 %v1277, %v1437
        %v1439 = vpop.f32.mrb[0].mxu0
        %1440 = vmatprep.mubr.bf16.mxu0 0
        %1441 = vmatmul.mubr.bf16.gmra.mrb[0].mxu0 %v300
        %v1442 = vpop.f32.mrb[0].mxu0
        %v1443 = vadd.f32 %v1282, %v1442
        %v1444 = vpop.f32.mrb[0].mxu0
        %v1445 = vpop.f32.mrb[0].mxu0
        %v1446 = vadd.f32 %v1285, %v1445
        %v1447 = vpop.f32.mrb[0].mxu0
        %1448 = vmatprep.mubr.bf16.mxu0 0
        %1449 = vmatmul.mubr.bf16.gmra.mrb[0].mxu0 %v303
        %v1450 = vpop.f32.mrb[0].mxu0
        %v1451 = vadd.f32 %v1290, %v1450
        %v1452 = vpop.f32.mrb[0].mxu0
        %v1453 = vpop.f32.mrb[0].mxu0
        %v1454 = vadd.f32 %v1293, %v1453
        %v1455 = vpop.f32.mrb[0].mxu0
        %1456 = vmatprep.mubr.bf16.mxu0 0
        %1457 = vmatmul.mubr.bf16.gmra.mrb[0].mxu0 %v306
        %v1458 = vpop.f32.mrb[0].mxu0
        %v1459 = vadd.f32 %v1298, %v1458
        %v1460 = vpop.f32.mrb[0].mxu0
        %v1461 = vpop.f32.mrb[0].mxu0
        %v1462 = vadd.f32 %v1301, %v1461
        %v1463 = vpop.f32.mrb[0].mxu0
        %1464 = vmatprep.mubr.bf16.mxu0 0
        %1465 = vmatmul.mubr.bf16.gmra.mrb[0].mxu0 %v309
        %v1466 = vpop.f32.mrb[0].mxu0
        %v1467 = vadd.f32 %v1306, %v1466
        %v1468 = vpop.f32.mrb[0].mxu0
        %v1469 = vpop.f32.mrb[0].mxu0
        %v1470 = vadd.f32 %v1309, %v1469
        %v1471 = vpop.f32.mrb[0].mxu0
        %1472 = vmatprep.mubr.bf16.mxu0 0
        %1473 = vmatmul.mubr.bf16.gmra.mrb[0].mxu0 %v312
        %v1474 = vpop.f32.mrb[0].mxu0
        %v1475 = vadd.f32 %v1314, %v1474
        %v1476 = vpop.f32.mrb[0].mxu0
        %v1477 = vpop.f32.mrb[0].mxu0
        %v1478 = vadd.f32 %v1317, %v1477
        %v1479 = vpop.f32.mrb[0].mxu0
        %1480 = vmatprep.mubr.bf16.mxu0 0
        %1481 = vmatmul.mubr.bf16.gmra.mrb[0].mxu0 %v315
        %v1482 = vpop.f32.mrb[0].mxu0
        %v1483 = vadd.f32 %v1322, %v1482
        %v1484 = vpop.f32.mrb[0].mxu0
        %v1485 = vpop.f32.mrb[0].mxu0
        %v1486 = vadd.f32 %v1325, %v1485
        %v1487 = vpop.f32.mrb[0].mxu0
        %1488 = vmatprep.mubr.bf16.mxu0 0
        %1489 = vmatmul.mubr.bf16.gmra.mrb[0].mxu0 %v318
        %v1490 = vpop.f32.mrb[0].mxu0
        %v1491 = vadd.f32 %v1330, %v1490
        %v1492 = vpop.f32.mrb[0].mxu0
        %v1493 = vpop.f32.mrb[0].mxu0
        %v1494 = vadd.f32 %v1333, %v1493
        %v1495 = vpop.f32.mrb[0].mxu0
        %1496 = vmatprep.mubr.bf16.mxu0 0
        %1497 = vmatmul.mubr.bf16.gmra.mrb[0].mxu0 %v321
        %v1498 = vpop.f32.mrb[0].mxu0
        %v1499 = vadd.f32 %v1338, %v1498
        %v1500 = vpop.f32.mrb[0].mxu0
        %v1501 = vpop.f32.mrb[0].mxu0
        %v1502 = vadd.f32 %v1341, %v1501
        %v1503 = vpop.f32.mrb[0].mxu0
        %1504 = vmatprep.mubr.bf16.mxu0 0
        %1505 = vmatmul.mubr.bf16.gmra.mrb[0].mxu0 %v324
        %v1506 = vpop.f32.mrb[0].mxu0
        %v1507 = vadd.f32 %v1346, %v1506
        %v1508 = vpop.f32.mrb[0].mxu0
        %v1509 = vpop.f32.mrb[0].mxu0
        %v1510 = vadd.f32 %v1349, %v1509
        %v1511 = vpop.f32.mrb[0].mxu0
        %1512 = vdwg.mxu0
        %v1513 = vpack.c.bf16 %v1037, %v1033
        %v1514 = vpack.c.bf16 %v1047, %v1043
        %v1515 = vpack.c.bf16 %v1057, %v1053
        %v1516 = vpack.c.bf16 %v1067, %v1063
        %v1517 = vpack.c.bf16 %v1077, %v1073
        %v1518 = vpack.c.bf16 %v1087, %v1083
        %v1519 = vpack.c.bf16 %v1097, %v1093
        %v1520 = vpack.c.bf16 %v1107, %v1103
        %v1521 = vpack.c.bf16 %v1117, %v1113
        %v1522 = vpack.c.bf16 %v1127, %v1123
        %v1523 = vpack.c.bf16 %v1137, %v1133
        %v1524 = vpack.c.bf16 %v1147, %v1143
        %v1525 = vpack.c.bf16 %v1157, %v1153
        %v1526 = vpack.c.bf16 %v1167, %v1163
        %v1527 = vpack.c.bf16 %v1177, %v1173
        %v1528 = vpack.c.bf16 %v1187, %v1183
        %v1529 = vpack.c.bf16 %v1039, %v1035
        %v1530 = vpack.c.bf16 %v1049, %v1045
        %v1531 = vpack.c.bf16 %v1059, %v1055
        %v1532 = vpack.c.bf16 %v1069, %v1065
        %v1533 = vpack.c.bf16 %v1079, %v1075
        %v1534 = vpack.c.bf16 %v1089, %v1085
        %v1535 = vpack.c.bf16 %v1099, %v1095
        %v1536 = vpack.c.bf16 %v1109, %v1105
        %v1537 = vpack.c.bf16 %v1119, %v1115
        %v1538 = vpack.c.bf16 %v1129, %v1125
        %v1539 = vpack.c.bf16 %v1139, %v1135
        %v1540 = vpack.c.bf16 %v1149, %v1145
        %v1541 = vpack.c.bf16 %v1159, %v1155
        %v1542 = vpack.c.bf16 %v1169, %v1165
        %v1543 = vpack.c.bf16 %v1179, %v1175
        %v1544 = vpack.c.bf16 %v1189, %v1185
        %v1545 = vpack.c.bf16 %v1390, %v1387
        %v1546 = vpack.c.bf16 %v1398, %v1395
        %v1547 = vpack.c.bf16 %v1406, %v1403
        %v1548 = vpack.c.bf16 %v1414, %v1411
        %v1549 = vpack.c.bf16 %v1422, %v1419
        %v1550 = vpack.c.bf16 %v1430, %v1427
        %v1551 = vpack.c.bf16 %v1438, %v1435
        %v1552 = vpack.c.bf16 %v1446, %v1443
        %v1553 = vpack.c.bf16 %v1454, %v1451
        %v1554 = vpack.c.bf16 %v1462, %v1459
        %v1555 = vpack.c.bf16 %v1470, %v1467
        %v1556 = vpack.c.bf16 %v1478, %v1475
        %v1557 = vpack.c.bf16 %v1486, %v1483
        %v1558 = vpack.c.bf16 %v1494, %v1491
        %v1559 = vpack.c.bf16 %v1502, %v1499
        %v1560 = vpack.c.bf16 %v1510, %v1507
        %v1561 = vlaneseq
        %v1562 = vshrl.u32 %v1561, 7
        %v1563 = vadd.s32 %v1562, 8
        %v1564 = vadd.s32 %v1562, 16
        %v1565 = vadd.s32 %v1562, 24
        %v1566 = vadd.s32 %v1562, 32
        %v1567 = vadd.s32 %v1562, 40
        %v1568 = vadd.s32 %v1562, 48
        %v1569 = vadd.s32 %v1562, 56
        %v1570 = vadd.s32 %v1562, 64
        %v1571 = vadd.s32 %v1562, 72
        %v1572 = vadd.s32 %v1562, 80
        %v1573 = vadd.s32 %v1562, 88
        %v1574 = vadd.s32 %v1562, 96
        %v1575 = vadd.s32 %v1562, 104
        %v1576 = vadd.s32 %v1562, 112
        %v1577 = vadd.s32 %v1562, 120
        %v1578 = vlaneseq
        %v1579 = vand.u32 %v1578, 127
        %vm1580 = vcmp.le.s32.totalorder %v1579, %v1562
        %vm1581 = vcmp.le.s32.totalorder %v1579, %v1563
        %vm1582 = vcmp.le.s32.totalorder %v1579, %v1564
        %vm1583 = vcmp.le.s32.totalorder %v1579, %v1565
        %vm1584 = vcmp.le.s32.totalorder %v1579, %v1566
        %vm1585 = vcmp.le.s32.totalorder %v1579, %v1567
        %vm1586 = vcmp.le.s32.totalorder %v1579, %v1568
        %vm1587 = vcmp.le.s32.totalorder %v1579, %v1569
        %vm1588 = vcmp.le.s32.totalorder %v1579, %v1570
        %vm1589 = vcmp.le.s32.totalorder %v1579, %v1571
        %vm1590 = vcmp.le.s32.totalorder %v1579, %v1572
        %vm1591 = vcmp.le.s32.totalorder %v1579, %v1573
        %vm1592 = vcmp.le.s32.totalorder %v1579, %v1574
        %vm1593 = vcmp.le.s32.totalorder %v1579, %v1575
        %vm1594 = vcmp.le.s32.totalorder %v1579, %v1576
        %vm1595 = vcmp.le.s32.totalorder %v1579, %v1577
        %1596 = vmatprep.subr.bf16.mxu0 0
        %1597 = vmatpush1.bf16.xpose.msra.mxu0 %v1529
        %1598 = vmatprep.subr.bf16.mxu0 0
        %1599 = vmatpush1.bf16.xpose.msra.mxu0 %v1530
        %1600 = vmatprep.subr.bf16.mxu0 0
        %1601 = vmatpush1.bf16.xpose.msra.mxu0 %v1531
        %1602 = vmatprep.subr.bf16.mxu0 0
        %1603 = vmatpush1.bf16.xpose.msra.mxu0 %v1532
        %1604 = vmatprep.subr.bf16.mxu0 0
        %1605 = vmatpush1.bf16.xpose.msra.mxu0 %v1533
        %1606 = vmatprep.subr.bf16.mxu0 0
        %1607 = vmatpush1.bf16.xpose.msra.mxu0 %v1534
        %1608 = vmatprep.subr.bf16.mxu0 0
        %1609 = vmatpush1.bf16.xpose.msra.mxu0 %v1535
        %1610 = vmatprep.subr.bf16.mxu0 0
        %1611 = vmatpush1.bf16.xpose.msra.mxu0 %v1536
        %1612 = vmatprep.subr.bf16.mxu0 0
        %1613 = vmatpush1.bf16.xpose.msra.mxu0 0
        %1614 = vmatprep.subr.bf16.mxu0 0
        %1615 = vmatpush1.bf16.xpose.msra.mxu0 0
        %1616 = vmatprep.subr.bf16.mxu0 0
        %1617 = vmatpush1.bf16.xpose.msra.mxu0 0
        %1618 = vmatprep.subr.bf16.mxu0 0
        %1619 = vmatpush1.bf16.xpose.msra.mxu0 0
        %1620 = vmatprep.subr.bf16.mxu0 0
        %1621 = vmatpush1.bf16.xpose.msra.mxu0 0
        %1622 = vmatprep.subr.bf16.mxu0 0
        %1623 = vmatpush1.bf16.xpose.msra.mxu0 0
        %1624 = vmatprep.subr.bf16.mxu0 0
        %1625 = vmatpush1.bf16.xpose.msra.mxu0 0
        %1626 = vmatprep.subr.bf16.mxu0 0
        %1627 = vmatpush1.bf16.xpose.msra.mxu0 0
        %1628 = vmatprep.mubr.bf16.mxu0 0
        %1629 = vmatmul.mubr.bf16.gmra.mrb[0].mxu0 %v1513
        %v1630 = vpop.f32.mrb[0].mxu0
        %v1631 = vadd.f32 0.0, %v1630
        %v1632 = vpop.f32.mrb[0].mxu0
        %v1633 = vpop.f32.mrb[0].mxu0
        %v1634 = vadd.f32 0.0, %v1633
        %v1635 = vpop.f32.mrb[0].mxu0
        %1636 = vmatprep.mubr.bf16.mxu0 0
        %1637 = vmatmul.mubr.bf16.gmra.mrb[0].mxu0 %v1514
        %v1638 = vpop.f32.mrb[0].mxu0
        %v1639 = vadd.f32 0.0, %v1638
        %v1640 = vpop.f32.mrb[0].mxu0
        %v1641 = vpop.f32.mrb[0].mxu0
        %v1642 = vadd.f32 0.0, %v1641
        %v1643 = vpop.f32.mrb[0].mxu0
        %1644 = vmatprep.mubr.bf16.mxu0 0
        %1645 = vmatmul.mubr.bf16.gmra.mrb[0].mxu0 %v1515
        %v1646 = vpop.f32.mrb[0].mxu0
        %v1647 = vadd.f32 0.0, %v1646
        %v1648 = vpop.f32.mrb[0].mxu0
        %v1649 = vpop.f32.mrb[0].mxu0
        %v1650 = vadd.f32 0.0, %v1649
        %v1651 = vpop.f32.mrb[0].mxu0
        %1652 = vmatprep.mubr.bf16.mxu0 0
        %1653 = vmatmul.mubr.bf16.gmra.mrb[0].mxu0 %v1516
        %v1654 = vpop.f32.mrb[0].mxu0
        %v1655 = vadd.f32 0.0, %v1654
        %v1656 = vpop.f32.mrb[0].mxu0
        %v1657 = vpop.f32.mrb[0].mxu0
        %v1658 = vadd.f32 0.0, %v1657
        %v1659 = vpop.f32.mrb[0].mxu0
        %1660 = vmatprep.mubr.bf16.mxu0 0
        %1661 = vmatmul.mubr.bf16.gmra.mrb[0].mxu0 %v1517
        %v1662 = vpop.f32.mrb[0].mxu0
        %v1663 = vadd.f32 0.0, %v1662
        %v1664 = vpop.f32.mrb[0].mxu0
        %v1665 = vpop.f32.mrb[0].mxu0
        %v1666 = vadd.f32 0.0, %v1665
        %v1667 = vpop.f32.mrb[0].mxu0
        %1668 = vmatprep.mubr.bf16.mxu0 0
        %1669 = vmatmul.mubr.bf16.gmra.mrb[0].mxu0 %v1518
        %v1670 = vpop.f32.mrb[0].mxu0
        %v1671 = vadd.f32 0.0, %v1670
        %v1672 = vpop.f32.mrb[0].mxu0
        %v1673 = vpop.f32.mrb[0].mxu0
        %v1674 = vadd.f32 0.0, %v1673
        %v1675 = vpop.f32.mrb[0].mxu0
        %1676 = vmatprep.mubr.bf16.mxu0 0
        %1677 = vmatmul.mubr.bf16.gmra.mrb[0].mxu0 %v1519
        %v1678 = vpop.f32.mrb[0].mxu0
        %v1679 = vadd.f32 0.0, %v1678
        %v1680 = vpop.f32.mrb[0].mxu0
        %v1681 = vpop.f32.mrb[0].mxu0
        %v1682 = vadd.f32 0.0, %v1681
        %v1683 = vpop.f32.mrb[0].mxu0
        %1684 = vmatprep.mubr.bf16.mxu0 0
        %1685 = vmatmul.mubr.bf16.gmra.mrb[0].mxu0 %v1520
        %v1686 = vpop.f32.mrb[0].mxu0
        %v1687 = vadd.f32 0.0, %v1686
        %v1688 = vpop.f32.mrb[0].mxu0
        %v1689 = vpop.f32.mrb[0].mxu0
        %v1690 = vadd.f32 0.0, %v1689
        %v1691 = vpop.f32.mrb[0].mxu0
        %1692 = vdwg.mxu0
        %v1693 = vsel %vm1580, %v1631, -inf
        %v1694 = vsel %vm1581, %v1634, -inf
        %v1695 = vsel %vm1582, %v1639, -inf
        %v1696 = vsel %vm1583, %v1642, -inf
        %v1697 = vsel %vm1584, %v1647, -inf
        %v1698 = vsel %vm1585, %v1650, -inf
        %v1699 = vsel %vm1586, %v1655, -inf
        %v1700 = vsel %vm1587, %v1658, -inf
        %v1701 = vsel %vm1588, %v1663, -inf
        %v1702 = vsel %vm1589, %v1666, -inf
        %v1703 = vsel %vm1590, %v1671, -inf
        %v1704 = vsel %vm1591, %v1674, -inf
        %v1705 = vsel %vm1592, %v1679, -inf
        %v1706 = vsel %vm1593, %v1682, -inf
        %v1707 = vsel %vm1594, %v1687, -inf
        %v1708 = vsel %vm1595, %v1690, -inf
        %1709 = vmax.xlane.f32.xlu0 %v1693
        %v1710 = vpop.xlane.xlu0 %1709
        %1711 = vmax.xlane.f32.xlu0 %v1694
        %v1712 = vpop.xlane.xlu0 %1711
        %1713 = vmax.xlane.f32.xlu0 %v1695
        %v1714 = vpop.xlane.xlu0 %1713
        %1715 = vmax.xlane.f32.xlu0 %v1696
        %v1716 = vpop.xlane.xlu0 %1715
        %1717 = vmax.xlane.f32.xlu0 %v1697
        %v1718 = vpop.xlane.xlu0 %1717
        %1719 = vmax.xlane.f32.xlu0 %v1698
        %v1720 = vpop.xlane.xlu0 %1719
        %1721 = vmax.xlane.f32.xlu0 %v1699
        %v1722 = vpop.xlane.xlu0 %1721
        %1723 = vmax.xlane.f32.xlu0 %v1700
        %v1724 = vpop.xlane.xlu0 %1723
        %1725 = vmax.xlane.f32.xlu0 %v1701
        %v1726 = vpop.xlane.xlu0 %1725
        %1727 = vmax.xlane.f32.xlu0 %v1702
        %v1728 = vpop.xlane.xlu0 %1727
        %1729 = vmax.xlane.f32.xlu0 %v1703
        %v1730 = vpop.xlane.xlu0 %1729
        %1731 = vmax.xlane.f32.xlu0 %v1704
        %v1732 = vpop.xlane.xlu0 %1731
        %1733 = vmax.xlane.f32.xlu0 %v1705
        %v1734 = vpop.xlane.xlu0 %1733
        %1735 = vmax.xlane.f32.xlu0 %v1706
        %v1736 = vpop.xlane.xlu0 %1735
        %1737 = vmax.xlane.f32.xlu0 %v1707
        %v1738 = vpop.xlane.xlu0 %1737
        %1739 = vmax.xlane.f32.xlu0 %v1708
        %v1740 = vpop.xlane.xlu0 %1739
        %v1741 = vsub.f32 %v1693, %v1710
        %v1742 = vsub.f32 %v1694, %v1712
        %v1743 = vsub.f32 %v1695, %v1714
        %v1744 = vsub.f32 %v1696, %v1716
        %v1745 = vsub.f32 %v1697, %v1718
        %v1746 = vsub.f32 %v1698, %v1720
        %v1747 = vsub.f32 %v1699, %v1722
        %v1748 = vsub.f32 %v1700, %v1724
        %v1749 = vsub.f32 %v1701, %v1726
        %v1750 = vsub.f32 %v1702, %v1728
        %v1751 = vsub.f32 %v1703, %v1730
        %v1752 = vsub.f32 %v1704, %v1732
        %v1753 = vsub.f32 %v1705, %v1734
        %v1754 = vsub.f32 %v1706, %v1736
        %v1755 = vsub.f32 %v1707, %v1738
        %v1756 = vsub.f32 %v1708, %v1740
        %v1757 = vmul.f32 %v1741, 1.442695
        %v1758 = vpow.pop %v1757
        %v1759 = vmul.f32 %v1742, 1.442695
        %v1760 = vpow.pop %v1759
        %v1761 = vmul.f32 %v1743, 1.442695
        %v1762 = vpow.pop %v1761
        %v1763 = vmul.f32 %v1744, 1.442695
        %v1764 = vpow.pop %v1763
        %v1765 = vmul.f32 %v1745, 1.442695
        %v1766 = vpow.pop %v1765
        %v1767 = vmul.f32 %v1746, 1.442695
        %v1768 = vpow.pop %v1767
        %v1769 = vmul.f32 %v1747, 1.442695
        %v1770 = vpow.pop %v1769
        %v1771 = vmul.f32 %v1748, 1.442695
        %v1772 = vpow.pop %v1771
        %v1773 = vmul.f32 %v1749, 1.442695
        %v1774 = vpow.pop %v1773
        %v1775 = vmul.f32 %v1750, 1.442695
        %v1776 = vpow.pop %v1775
        %v1777 = vmul.f32 %v1751, 1.442695
        %v1778 = vpow.pop %v1777
        %v1779 = vmul.f32 %v1752, 1.442695
        %v1780 = vpow.pop %v1779
        %v1781 = vmul.f32 %v1753, 1.442695
        %v1782 = vpow.pop %v1781
        %v1783 = vmul.f32 %v1754, 1.442695
        %v1784 = vpow.pop %v1783
        %v1785 = vmul.f32 %v1755, 1.442695
        %v1786 = vpow.pop %v1785
        %v1787 = vmul.f32 %v1756, 1.442695
        %v1788 = vpow.pop %v1787
        %1789 = vadd.xlane.f32.xlu0 %v1758
        %v1790 = vpop.xlane.xlu0 %1789
        %1791 = vadd.xlane.f32.xlu0 %v1760
        %v1792 = vpop.xlane.xlu0 %1791
        %1793 = vadd.xlane.f32.xlu0 %v1762
        %v1794 = vpop.xlane.xlu0 %1793
        %1795 = vadd.xlane.f32.xlu0 %v1764
        %v1796 = vpop.xlane.xlu0 %1795
        %1797 = vadd.xlane.f32.xlu0 %v1766
        %v1798 = vpop.xlane.xlu0 %1797
        %1799 = vadd.xlane.f32.xlu0 %v1768
        %v1800 = vpop.xlane.xlu0 %1799
        %1801 = vadd.xlane.f32.xlu0 %v1770
        %v1802 = vpop.xlane.xlu0 %1801
        %1803 = vadd.xlane.f32.xlu0 %v1772
        %v1804 = vpop.xlane.xlu0 %1803
        %1805 = vadd.xlane.f32.xlu0 %v1774
        %v1806 = vpop.xlane.xlu0 %1805
        %1807 = vadd.xlane.f32.xlu0 %v1776
        %v1808 = vpop.xlane.xlu0 %1807
        %1809 = vadd.xlane.f32.xlu0 %v1778
        %v1810 = vpop.xlane.xlu0 %1809
        %1811 = vadd.xlane.f32.xlu0 %v1780
        %v1812 = vpop.xlane.xlu0 %1811
        %1813 = vadd.xlane.f32.xlu0 %v1782
        %v1814 = vpop.xlane.xlu0 %1813
        %1815 = vadd.xlane.f32.xlu0 %v1784
        %v1816 = vpop.xlane.xlu0 %1815
        %1817 = vadd.xlane.f32.xlu0 %v1786
        %v1818 = vpop.xlane.xlu0 %1817
        %1819 = vadd.xlane.f32.xlu0 %v1788
        %v1820 = vpop.xlane.xlu0 %1819
        %v1821 = vrcp.pop %v1790
        %v1822 = vrcp.pop %v1792
        %v1823 = vrcp.pop %v1794
        %v1824 = vrcp.pop %v1796
        %v1825 = vrcp.pop %v1798
        %v1826 = vrcp.pop %v1800
        %v1827 = vrcp.pop %v1802
        %v1828 = vrcp.pop %v1804
        %v1829 = vrcp.pop %v1806
        %v1830 = vrcp.pop %v1808
        %v1831 = vrcp.pop %v1810
        %v1832 = vrcp.pop %v1812
        %v1833 = vrcp.pop %v1814
        %v1834 = vrcp.pop %v1816
        %v1835 = vrcp.pop %v1818
        %v1836 = vrcp.pop %v1820
        %v1837 = vmul.f32 %v1758, %v1821
        %v1838 = vmul.f32 %v1760, %v1822
        %v1839 = vmul.f32 %v1762, %v1823
        %v1840 = vmul.f32 %v1764, %v1824
        %v1841 = vmul.f32 %v1766, %v1825
        %v1842 = vmul.f32 %v1768, %v1826
        %v1843 = vmul.f32 %v1770, %v1827
        %v1844 = vmul.f32 %v1772, %v1828
        %v1845 = vmul.f32 %v1774, %v1829
        %v1846 = vmul.f32 %v1776, %v1830
        %v1847 = vmul.f32 %v1778, %v1831
        %v1848 = vmul.f32 %v1780, %v1832
        %v1849 = vmul.f32 %v1782, %v1833
        %v1850 = vmul.f32 %v1784, %v1834
        %v1851 = vmul.f32 %v1786, %v1835
        %v1852 = vmul.f32 %v1788, %v1836
        %v1853 = vpack.c.bf16 %v1838, %v1837
        %v1854 = vpack.c.bf16 %v1840, %v1839
        %v1855 = vpack.c.bf16 %v1842, %v1841
        %v1856 = vpack.c.bf16 %v1844, %v1843
        %v1857 = vpack.c.bf16 %v1846, %v1845
        %v1858 = vpack.c.bf16 %v1848, %v1847
        %v1859 = vpack.c.bf16 %v1850, %v1849
        %v1860 = vpack.c.bf16 %v1852, %v1851
        %1861 = vmatprep.subr.bf16.mxu0 0
        %1862 = vmatpush1.bf16.msra.mxu0 %v1545
        %1863 = vmatprep.subr.bf16.mxu0 0
        %1864 = vmatpush1.bf16.msra.mxu0 %v1546
        %1865 = vmatprep.subr.bf16.mxu0 0
        %1866 = vmatpush1.bf16.msra.mxu0 %v1547
        %1867 = vmatprep.subr.bf16.mxu0 0
        %1868 = vmatpush1.bf16.msra.mxu0 %v1548
        %1869 = vmatprep.subr.bf16.mxu0 0
        %1870 = vmatpush1.bf16.msra.mxu0 %v1549
        %1871 = vmatprep.subr.bf16.mxu0 0
        %1872 = vmatpush1.bf16.msra.mxu0 %v1550
        %1873 = vmatprep.subr.bf16.mxu0 0
        %1874 = vmatpush1.bf16.msra.mxu0 %v1551
        %1875 = vmatprep.subr.bf16.mxu0 0
        %1876 = vmatpush1.bf16.msra.mxu0 %v1552
        %1877 = vmatprep.subr.bf16.mxu0 0
        %1878 = vmatpush1.bf16.msra.mxu0 0
        %1879 = vmatprep.subr.bf16.mxu0 0
        %1880 = vmatpush1.bf16.msra.mxu0 0
        %1881 = vmatprep.subr.bf16.mxu0 0
        %1882 = vmatpush1.bf16.msra.mxu0 0
        %1883 = vmatprep.subr.bf16.mxu0 0
        %1884 = vmatpush1.bf16.msra.mxu0 0
        %1885 = vmatprep.subr.bf16.mxu0 0
        %1886 = vmatpush1.bf16.msra.mxu0 0
        %1887 = vmatprep.subr.bf16.mxu0 0
        %1888 = vmatpush1.bf16.msra.mxu0 0
        %1889 = vmatprep.subr.bf16.mxu0 0
        %1890 = vmatpush1.bf16.msra.mxu0 0
        %1891 = vmatprep.subr.bf16.mxu0 0
        %1892 = vmatpush1.bf16.msra.mxu0 0
        %1893 = vmatprep.mubr.bf16.mxu0 0
        %1894 = vmatmul.mubr.bf16.gmra.mrb[0].mxu0 %v1853
        %v1895 = vpop.f32.mrb[0].mxu0
        %v1896 = vadd.f32 0.0, %v1895
        %v1897 = vpop.f32.mrb[0].mxu0
        %v1898 = vpop.f32.mrb[0].mxu0
        %v1899 = vadd.f32 0.0, %v1898
        %v1900 = vpop.f32.mrb[0].mxu0
        %1901 = vmatprep.mubr.bf16.mxu0 0
        %1902 = vmatmul.mubr.bf16.gmra.mrb[0].mxu0 %v1854
        %v1903 = vpop.f32.mrb[0].mxu0
        %v1904 = vadd.f32 0.0, %v1903
        %v1905 = vpop.f32.mrb[0].mxu0
        %v1906 = vpop.f32.mrb[0].mxu0
        %v1907 = vadd.f32 0.0, %v1906
        %v1908 = vpop.f32.mrb[0].mxu0
        %1909 = vmatprep.mubr.bf16.mxu0 0
        %1910 = vmatmul.mubr.bf16.gmra.mrb[0].mxu0 %v1855
        %v1911 = vpop.f32.mrb[0].mxu0
        %v1912 = vadd.f32 0.0, %v1911
        %v1913 = vpop.f32.mrb[0].mxu0
        %v1914 = vpop.f32.mrb[0].mxu0
        %v1915 = vadd.f32 0.0, %v1914
        %v1916 = vpop.f32.mrb[0].mxu0
        %1917 = vmatprep.mubr.bf16.mxu0 0
        %1918 = vmatmul.mubr.bf16.gmra.mrb[0].mxu0 %v1856
        %v1919 = vpop.f32.mrb[0].mxu0
        %v1920 = vadd.f32 0.0, %v1919
        %v1921 = vpop.f32.mrb[0].mxu0
        %v1922 = vpop.f32.mrb[0].mxu0
        %v1923 = vadd.f32 0.0, %v1922
        %v1924 = vpop.f32.mrb[0].mxu0
        %1925 = vmatprep.mubr.bf16.mxu0 0
        %1926 = vmatmul.mubr.bf16.gmra.mrb[0].mxu0 %v1857
        %v1927 = vpop.f32.mrb[0].mxu0
        %v1928 = vadd.f32 0.0, %v1927
        %v1929 = vpop.f32.mrb[0].mxu0
        %v1930 = vpop.f32.mrb[0].mxu0
        %v1931 = vadd.f32 0.0, %v1930
        %v1932 = vpop.f32.mrb[0].mxu0
        %1933 = vmatprep.mubr.bf16.mxu0 0
        %1934 = vmatmul.mubr.bf16.gmra.mrb[0].mxu0 %v1858
        %v1935 = vpop.f32.mrb[0].mxu0
        %v1936 = vadd.f32 0.0, %v1935
        %v1937 = vpop.f32.mrb[0].mxu0
        %v1938 = vpop.f32.mrb[0].mxu0
        %v1939 = vadd.f32 0.0, %v1938
        %v1940 = vpop.f32.mrb[0].mxu0
        %1941 = vmatprep.mubr.bf16.mxu0 0
        %1942 = vmatmul.mubr.bf16.gmra.mrb[0].mxu0 %v1859
        %v1943 = vpop.f32.mrb[0].mxu0
        %v1944 = vadd.f32 0.0, %v1943
        %v1945 = vpop.f32.mrb[0].mxu0
        %v1946 = vpop.f32.mrb[0].mxu0
        %v1947 = vadd.f32 0.0, %v1946
        %v1948 = vpop.f32.mrb[0].mxu0
        %1949 = vmatprep.mubr.bf16.mxu0 0
        %1950 = vmatmul.mubr.bf16.gmra.mrb[0].mxu0 %v1860
        %v1951 = vpop.f32.mrb[0].mxu0
        %v1952 = vadd.f32 0.0, %v1951
        %v1953 = vpop.f32.mrb[0].mxu0
        %v1954 = vpop.f32.mrb[0].mxu0
        %v1955 = vadd.f32 0.0, %v1954
        %v1956 = vpop.f32.mrb[0].mxu0
        %1957 = vdwg.mxu0
        %1958 = vst [vmem:[%s177] sm:$0xff] %v1896
        %1959 = vst [vmem:[%s177 + $0x8] sm:$0xff] %v1899
        %1960 = vst [vmem:[%s177 + $0x10] sm:$0xff] %v1904
        %1961 = vst [vmem:[%s177 + $0x18] sm:$0xff] %v1907
        %1962 = vst [vmem:[%s177 + $0x20] sm:$0xff] %v1912
        %1963 = vst [vmem:[%s177 + $0x28] sm:$0xff] %v1915
        %1964 = vst [vmem:[%s177 + $0x30] sm:$0xff] %v1920
        %1965 = vst [vmem:[%s177 + $0x38] sm:$0xff] %v1923
        %1966 = vst [vmem:[%s177 + $0x40] sm:$0xff] %v1928
        %1967 = vst [vmem:[%s177 + $0x48] sm:$0xff] %v1931
        %1968 = vst [vmem:[%s177 + $0x50] sm:$0xff] %v1936
        %1969 = vst [vmem:[%s177 + $0x58] sm:$0xff] %v1939
        %1970 = vst [vmem:[%s177 + $0x60] sm:$0xff] %v1944
        %1971 = vst [vmem:[%s177 + $0x68] sm:$0xff] %v1947
        %1972 = vst [vmem:[%s177 + $0x70] sm:$0xff] %v1952
        %1973 = vst [vmem:[%s177 + $0x78] sm:$0xff] %v1955
        %1974 = vmatprep.subr.bf16.mxu0 0
        %1975 = vmatpush1.bf16.xpose.msra.mxu0 %v1537
        %1976 = vmatprep.subr.bf16.mxu0 0
        %1977 = vmatpush1.bf16.xpose.msra.mxu0 %v1538
        %1978 = vmatprep.subr.bf16.mxu0 0
        %1979 = vmatpush1.bf16.xpose.msra.mxu0 %v1539
        %1980 = vmatprep.subr.bf16.mxu0 0
        %1981 = vmatpush1.bf16.xpose.msra.mxu0 %v1540
        %1982 = vmatprep.subr.bf16.mxu0 0
        %1983 = vmatpush1.bf16.xpose.msra.mxu0 %v1541
        %1984 = vmatprep.subr.bf16.mxu0 0
        %1985 = vmatpush1.bf16.xpose.msra.mxu0 %v1542
        %1986 = vmatprep.subr.bf16.mxu0 0
        %1987 = vmatpush1.bf16.xpose.msra.mxu0 %v1543
        %1988 = vmatprep.subr.bf16.mxu0 0
        %1989 = vmatpush1.bf16.xpose.msra.mxu0 %v1544
        %1990 = vmatprep.subr.bf16.mxu0 0
        %1991 = vmatpush1.bf16.xpose.msra.mxu0 0
        %1992 = vmatprep.subr.bf16.mxu0 0
        %1993 = vmatpush1.bf16.xpose.msra.mxu0 0
        %1994 = vmatprep.subr.bf16.mxu0 0
        %1995 = vmatpush1.bf16.xpose.msra.mxu0 0
        %1996 = vmatprep.subr.bf16.mxu0 0
        %1997 = vmatpush1.bf16.xpose.msra.mxu0 0
        %1998 = vmatprep.subr.bf16.mxu0 0
        %1999 = vmatpush1.bf16.xpose.msra.mxu0 0
        %2000 = vmatprep.subr.bf16.mxu0 0
        %2001 = vmatpush1.bf16.xpose.msra.mxu0 0
        %2002 = vmatprep.subr.bf16.mxu0 0
        %2003 = vmatpush1.bf16.xpose.msra.mxu0 0
        %2004 = vmatprep.subr.bf16.mxu0 0
        %2005 = vmatpush1.bf16.xpose.msra.mxu0 0
        %2006 = vmatprep.mubr.bf16.mxu0 0
        %2007 = vmatmul.mubr.bf16.gmra.mrb[0].mxu0 %v1521
        %v2008 = vpop.f32.mrb[0].mxu0
        %v2009 = vadd.f32 0.0, %v2008
        %v2010 = vpop.f32.mrb[0].mxu0
        %v2011 = vpop.f32.mrb[0].mxu0
        %v2012 = vadd.f32 0.0, %v2011
        %v2013 = vpop.f32.mrb[0].mxu0
        %2014 = vmatprep.mubr.bf16.mxu0 0
        %2015 = vmatmul.mubr.bf16.gmra.mrb[0].mxu0 %v1522
        %v2016 = vpop.f32.mrb[0].mxu0
        %v2017 = vadd.f32 0.0, %v2016
        %v2018 = vpop.f32.mrb[0].mxu0
        %v2019 = vpop.f32.mrb[0].mxu0
        %v2020 = vadd.f32 0.0, %v2019
        %v2021 = vpop.f32.mrb[0].mxu0
        %2022 = vmatprep.mubr.bf16.mxu0 0
        %2023 = vmatmul.mubr.bf16.gmra.mrb[0].mxu0 %v1523
        %v2024 = vpop.f32.mrb[0].mxu0
        %v2025 = vadd.f32 0.0, %v2024
        %v2026 = vpop.f32.mrb[0].mxu0
        %v2027 = vpop.f32.mrb[0].mxu0
        %v2028 = vadd.f32 0.0, %v2027
        %v2029 = vpop.f32.mrb[0].mxu0
        %2030 = vmatprep.mubr.bf16.mxu0 0
        %2031 = vmatmul.mubr.bf16.gmra.mrb[0].mxu0 %v1524
        %v2032 = vpop.f32.mrb[0].mxu0
        %v2033 = vadd.f32 0.0, %v2032
        %v2034 = vpop.f32.mrb[0].mxu0
        %v2035 = vpop.f32.mrb[0].mxu0
        %v2036 = vadd.f32 0.0, %v2035
        %v2037 = vpop.f32.mrb[0].mxu0
        %2038 = vmatprep.mubr.bf16.mxu0 0
        %2039 = vmatmul.mubr.bf16.gmra.mrb[0].mxu0 %v1525
        %v2040 = vpop.f32.mrb[0].mxu0
        %v2041 = vadd.f32 0.0, %v2040
        %v2042 = vpop.f32.mrb[0].mxu0
        %v2043 = vpop.f32.mrb[0].mxu0
        %v2044 = vadd.f32 0.0, %v2043
        %v2045 = vpop.f32.mrb[0].mxu0
        %2046 = vmatprep.mubr.bf16.mxu0 0
        %2047 = vmatmul.mubr.bf16.gmra.mrb[0].mxu0 %v1526
        %v2048 = vpop.f32.mrb[0].mxu0
        %v2049 = vadd.f32 0.0, %v2048
        %v2050 = vpop.f32.mrb[0].mxu0
        %v2051 = vpop.f32.mrb[0].mxu0
        %v2052 = vadd.f32 0.0, %v2051
        %v2053 = vpop.f32.mrb[0].mxu0
        %2054 = vmatprep.mubr.bf16.mxu0 0
        %2055 = vmatmul.mubr.bf16.gmra.mrb[0].mxu0 %v1527
        %v2056 = vpop.f32.mrb[0].mxu0
        %v2057 = vadd.f32 0.0, %v2056
        %v2058 = vpop.f32.mrb[0].mxu0
        %v2059 = vpop.f32.mrb[0].mxu0
        %v2060 = vadd.f32 0.0, %v2059
        %v2061 = vpop.f32.mrb[0].mxu0
        %2062 = vmatprep.mubr.bf16.mxu0 0
        %2063 = vmatmul.mubr.bf16.gmra.mrb[0].mxu0 %v1528
        %v2064 = vpop.f32.mrb[0].mxu0
        %v2065 = vadd.f32 0.0, %v2064
        %v2066 = vpop.f32.mrb[0].mxu0
        %v2067 = vpop.f32.mrb[0].mxu0
        %v2068 = vadd.f32 0.0, %v2067
        %v2069 = vpop.f32.mrb[0].mxu0
        %2070 = vdwg.mxu0
        %v2071 = vsel %vm1580, %v2009, -inf
        %v2072 = vsel %vm1581, %v2012, -inf
        %v2073 = vsel %vm1582, %v2017, -inf
        %v2074 = vsel %vm1583, %v2020, -inf
        %v2075 = vsel %vm1584, %v2025, -inf
        %v2076 = vsel %vm1585, %v2028, -inf
        %v2077 = vsel %vm1586, %v2033, -inf
        %v2078 = vsel %vm1587, %v2036, -inf
        %v2079 = vsel %vm1588, %v2041, -inf
        %v2080 = vsel %vm1589, %v2044, -inf
        %v2081 = vsel %vm1590, %v2049, -inf
        %v2082 = vsel %vm1591, %v2052, -inf
        %v2083 = vsel %vm1592, %v2057, -inf
        %v2084 = vsel %vm1593, %v2060, -inf
        %v2085 = vsel %vm1594, %v2065, -inf
        %v2086 = vsel %vm1595, %v2068, -inf
        %2087 = vmax.xlane.f32.xlu0 %v2071
        %v2088 = vpop.xlane.xlu0 %2087
        %2089 = vmax.xlane.f32.xlu0 %v2072
        %v2090 = vpop.xlane.xlu0 %2089
        %2091 = vmax.xlane.f32.xlu0 %v2073
        %v2092 = vpop.xlane.xlu0 %2091
        %2093 = vmax.xlane.f32.xlu0 %v2074
        %v2094 = vpop.xlane.xlu0 %2093
        %2095 = vmax.xlane.f32.xlu0 %v2075
        %v2096 = vpop.xlane.xlu0 %2095
        %2097 = vmax.xlane.f32.xlu0 %v2076
        %v2098 = vpop.xlane.xlu0 %2097
        %2099 = vmax.xlane.f32.xlu0 %v2077
        %v2100 = vpop.xlane.xlu0 %2099
        %2101 = vmax.xlane.f32.xlu0 %v2078
        %v2102 = vpop.xlane.xlu0 %2101
        %2103 = vmax.xlane.f32.xlu0 %v2079
        %v2104 = vpop.xlane.xlu0 %2103
        %2105 = vmax.xlane.f32.xlu0 %v2080
        %v2106 = vpop.xlane.xlu0 %2105
        %2107 = vmax.xlane.f32.xlu0 %v2081
        %v2108 = vpop.xlane.xlu0 %2107
        %2109 = vmax.xlane.f32.xlu0 %v2082
        %v2110 = vpop.xlane.xlu0 %2109
        %2111 = vmax.xlane.f32.xlu0 %v2083
        %v2112 = vpop.xlane.xlu0 %2111
        %2113 = vmax.xlane.f32.xlu0 %v2084
        %v2114 = vpop.xlane.xlu0 %2113
        %2115 = vmax.xlane.f32.xlu0 %v2085
        %v2116 = vpop.xlane.xlu0 %2115
        %2117 = vmax.xlane.f32.xlu0 %v2086
        %v2118 = vpop.xlane.xlu0 %2117
        %v2119 = vsub.f32 %v2071, %v2088
        %v2120 = vsub.f32 %v2072, %v2090
        %v2121 = vsub.f32 %v2073, %v2092
        %v2122 = vsub.f32 %v2074, %v2094
        %v2123 = vsub.f32 %v2075, %v2096
        %v2124 = vsub.f32 %v2076, %v2098
        %v2125 = vsub.f32 %v2077, %v2100
        %v2126 = vsub.f32 %v2078, %v2102
        %v2127 = vsub.f32 %v2079, %v2104
        %v2128 = vsub.f32 %v2080, %v2106
        %v2129 = vsub.f32 %v2081, %v2108
        %v2130 = vsub.f32 %v2082, %v2110
        %v2131 = vsub.f32 %v2083, %v2112
        %v2132 = vsub.f32 %v2084, %v2114
        %v2133 = vsub.f32 %v2085, %v2116
        %v2134 = vsub.f32 %v2086, %v2118
        %v2135 = vmul.f32 %v2119, 1.442695
        %v2136 = vpow.pop %v2135
        %v2137 = vmul.f32 %v2120, 1.442695
        %v2138 = vpow.pop %v2137
        %v2139 = vmul.f32 %v2121, 1.442695
        %v2140 = vpow.pop %v2139
        %v2141 = vmul.f32 %v2122, 1.442695
        %v2142 = vpow.pop %v2141
        %v2143 = vmul.f32 %v2123, 1.442695
        %v2144 = vpow.pop %v2143
        %v2145 = vmul.f32 %v2124, 1.442695
        %v2146 = vpow.pop %v2145
        %v2147 = vmul.f32 %v2125, 1.442695
        %v2148 = vpow.pop %v2147
        %v2149 = vmul.f32 %v2126, 1.442695
        %v2150 = vpow.pop %v2149
        %v2151 = vmul.f32 %v2127, 1.442695
        %v2152 = vpow.pop %v2151
        %v2153 = vmul.f32 %v2128, 1.442695
        %v2154 = vpow.pop %v2153
        %v2155 = vmul.f32 %v2129, 1.442695
        %v2156 = vpow.pop %v2155
        %v2157 = vmul.f32 %v2130, 1.442695
        %v2158 = vpow.pop %v2157
        %v2159 = vmul.f32 %v2131, 1.442695
        %v2160 = vpow.pop %v2159
        %v2161 = vmul.f32 %v2132, 1.442695
        %v2162 = vpow.pop %v2161
        %v2163 = vmul.f32 %v2133, 1.442695
        %v2164 = vpow.pop %v2163
        %v2165 = vmul.f32 %v2134, 1.442695
        %v2166 = vpow.pop %v2165
        %2167 = vadd.xlane.f32.xlu0 %v2136
        %v2168 = vpop.xlane.xlu0 %2167
        %2169 = vadd.xlane.f32.xlu0 %v2138
        %v2170 = vpop.xlane.xlu0 %2169
        %2171 = vadd.xlane.f32.xlu0 %v2140
        %v2172 = vpop.xlane.xlu0 %2171
        %2173 = vadd.xlane.f32.xlu0 %v2142
        %v2174 = vpop.xlane.xlu0 %2173
        %2175 = vadd.xlane.f32.xlu0 %v2144
        %v2176 = vpop.xlane.xlu0 %2175
        %2177 = vadd.xlane.f32.xlu0 %v2146
        %v2178 = vpop.xlane.xlu0 %2177
        %2179 = vadd.xlane.f32.xlu0 %v2148
        %v2180 = vpop.xlane.xlu0 %2179
        %2181 = vadd.xlane.f32.xlu0 %v2150
        %v2182 = vpop.xlane.xlu0 %2181
        %2183 = vadd.xlane.f32.xlu0 %v2152
        %v2184 = vpop.xlane.xlu0 %2183
        %2185 = vadd.xlane.f32.xlu0 %v2154
        %v2186 = vpop.xlane.xlu0 %2185
        %2187 = vadd.xlane.f32.xlu0 %v2156
        %v2188 = vpop.xlane.xlu0 %2187
        %2189 = vadd.xlane.f32.xlu0 %v2158
        %v2190 = vpop.xlane.xlu0 %2189
        %2191 = vadd.xlane.f32.xlu0 %v2160
        %v2192 = vpop.xlane.xlu0 %2191
        %2193 = vadd.xlane.f32.xlu0 %v2162
        %v2194 = vpop.xlane.xlu0 %2193
        %2195 = vadd.xlane.f32.xlu0 %v2164
        %v2196 = vpop.xlane.xlu0 %2195
        %2197 = vadd.xlane.f32.xlu0 %v2166
        %v2198 = vpop.xlane.xlu0 %2197
        %v2199 = vrcp.pop %v2168
        %v2200 = vrcp.pop %v2170
        %v2201 = vrcp.pop %v2172
        %v2202 = vrcp.pop %v2174
        %v2203 = vrcp.pop %v2176
        %v2204 = vrcp.pop %v2178
        %v2205 = vrcp.pop %v2180
        %v2206 = vrcp.pop %v2182
        %v2207 = vrcp.pop %v2184
        %v2208 = vrcp.pop %v2186
        %v2209 = vrcp.pop %v2188
        %v2210 = vrcp.pop %v2190
        %v2211 = vrcp.pop %v2192
        %v2212 = vrcp.pop %v2194
        %v2213 = vrcp.pop %v2196
        %v2214 = vrcp.pop %v2198
        %v2215 = vmul.f32 %v2136, %v2199
        %v2216 = vmul.f32 %v2138, %v2200
        %v2217 = vmul.f32 %v2140, %v2201
        %v2218 = vmul.f32 %v2142, %v2202
        %v2219 = vmul.f32 %v2144, %v2203
        %v2220 = vmul.f32 %v2146, %v2204
        %v2221 = vmul.f32 %v2148, %v2205
        %v2222 = vmul.f32 %v2150, %v2206
        %v2223 = vmul.f32 %v2152, %v2207
        %v2224 = vmul.f32 %v2154, %v2208
        %v2225 = vmul.f32 %v2156, %v2209
        %v2226 = vmul.f32 %v2158, %v2210
        %v2227 = vmul.f32 %v2160, %v2211
        %v2228 = vmul.f32 %v2162, %v2212
        %v2229 = vmul.f32 %v2164, %v2213
        %v2230 = vmul.f32 %v2166, %v2214
        %v2231 = vpack.c.bf16 %v2216, %v2215
        %v2232 = vpack.c.bf16 %v2218, %v2217
        %v2233 = vpack.c.bf16 %v2220, %v2219
        %v2234 = vpack.c.bf16 %v2222, %v2221
        %v2235 = vpack.c.bf16 %v2224, %v2223
        %v2236 = vpack.c.bf16 %v2226, %v2225
        %v2237 = vpack.c.bf16 %v2228, %v2227
        %v2238 = vpack.c.bf16 %v2230, %v2229
        %2239 = vmatprep.subr.bf16.mxu0 0
        %2240 = vmatpush1.bf16.msra.mxu0 %v1553
        %2241 = vmatprep.subr.bf16.mxu0 0
        %2242 = vmatpush1.bf16.msra.mxu0 %v1554
        %2243 = vmatprep.subr.bf16.mxu0 0
        %2244 = vmatpush1.bf16.msra.mxu0 %v1555
        %2245 = vmatprep.subr.bf16.mxu0 0
        %2246 = vmatpush1.bf16.msra.mxu0 %v1556
        %2247 = vmatprep.subr.bf16.mxu0 0
        %2248 = vmatpush1.bf16.msra.mxu0 %v1557
        %2249 = vmatprep.subr.bf16.mxu0 0
        %2250 = vmatpush1.bf16.msra.mxu0 %v1558
        %2251 = vmatprep.subr.bf16.mxu0 0
        %2252 = vmatpush1.bf16.msra.mxu0 %v1559
        %2253 = vmatprep.subr.bf16.mxu0 0
        %2254 = vmatpush1.bf16.msra.mxu0 %v1560
        %2255 = vmatprep.subr.bf16.mxu0 0
        %2256 = vmatpush1.bf16.msra.mxu0 0
        %2257 = vmatprep.subr.bf16.mxu0 0
        %2258 = vmatpush1.bf16.msra.mxu0 0
        %2259 = vmatprep.subr.bf16.mxu0 0
        %2260 = vmatpush1.bf16.msra.mxu0 0
        %2261 = vmatprep.subr.bf16.mxu0 0
        %2262 = vmatpush1.bf16.msra.mxu0 0
        %2263 = vmatprep.subr.bf16.mxu0 0
        %2264 = vmatpush1.bf16.msra.mxu0 0
        %2265 = vmatprep.subr.bf16.mxu0 0
        %2266 = vmatpush1.bf16.msra.mxu0 0
        %2267 = vmatprep.subr.bf16.mxu0 0
        %2268 = vmatpush1.bf16.msra.mxu0 0
        %2269 = vmatprep.subr.bf16.mxu0 0
        %2270 = vmatpush1.bf16.msra.mxu0 0
        %2271 = vmatprep.mubr.bf16.mxu0 0
        %2272 = vmatmul.mubr.bf16.gmra.mrb[0].mxu0 %v2231
        %v2273 = vpop.f32.mrb[0].mxu0
        %v2274 = vadd.f32 0.0, %v2273
        %v2275 = vpop.f32.mrb[0].mxu0
        %v2276 = vpop.f32.mrb[0].mxu0
        %v2277 = vadd.f32 0.0, %v2276
        %v2278 = vpop.f32.mrb[0].mxu0
        %2279 = vmatprep.mubr.bf16.mxu0 0
        %2280 = vmatmul.mubr.bf16.gmra.mrb[0].mxu0 %v2232
        %v2281 = vpop.f32.mrb[0].mxu0
        %v2282 = vadd.f32 0.0, %v2281
        %v2283 = vpop.f32.mrb[0].mxu0
        %v2284 = vpop.f32.mrb[0].mxu0
        %v2285 = vadd.f32 0.0, %v2284
        %v2286 = vpop.f32.mrb[0].mxu0
        %2287 = vmatprep.mubr.bf16.mxu0 0
        %2288 = vmatmul.mubr.bf16.gmra.mrb[0].mxu0 %v2233
        %v2289 = vpop.f32.mrb[0].mxu0
        %v2290 = vadd.f32 0.0, %v2289
        %v2291 = vpop.f32.mrb[0].mxu0
        %v2292 = vpop.f32.mrb[0].mxu0
        %v2293 = vadd.f32 0.0, %v2292
        %v2294 = vpop.f32.mrb[0].mxu0
        %2295 = vmatprep.mubr.bf16.mxu0 0
        %2296 = vmatmul.mubr.bf16.gmra.mrb[0].mxu0 %v2234
        %v2297 = vpop.f32.mrb[0].mxu0
        %v2298 = vadd.f32 0.0, %v2297
        %v2299 = vpop.f32.mrb[0].mxu0
        %v2300 = vpop.f32.mrb[0].mxu0
        %v2301 = vadd.f32 0.0, %v2300
        %v2302 = vpop.f32.mrb[0].mxu0
        %2303 = vmatprep.mubr.bf16.mxu0 0
        %2304 = vmatmul.mubr.bf16.gmra.mrb[0].mxu0 %v2235
        %v2305 = vpop.f32.mrb[0].mxu0
        %v2306 = vadd.f32 0.0, %v2305
        %v2307 = vpop.f32.mrb[0].mxu0
        %v2308 = vpop.f32.mrb[0].mxu0
        %v2309 = vadd.f32 0.0, %v2308
        %v2310 = vpop.f32.mrb[0].mxu0
        %2311 = vmatprep.mubr.bf16.mxu0 0
        %2312 = vmatmul.mubr.bf16.gmra.mrb[0].mxu0 %v2236
        %v2313 = vpop.f32.mrb[0].mxu0
        %v2314 = vadd.f32 0.0, %v2313
        %v2315 = vpop.f32.mrb[0].mxu0
        %v2316 = vpop.f32.mrb[0].mxu0
        %v2317 = vadd.f32 0.0, %v2316
        %v2318 = vpop.f32.mrb[0].mxu0
        %2319 = vmatprep.mubr.bf16.mxu0 0
        %2320 = vmatmul.mubr.bf16.gmra.mrb[0].mxu0 %v2237
        %v2321 = vpop.f32.mrb[0].mxu0
        %v2322 = vadd.f32 0.0, %v2321
        %v2323 = vpop.f32.mrb[0].mxu0
        %v2324 = vpop.f32.mrb[0].mxu0
        %v2325 = vadd.f32 0.0, %v2324
        %v2326 = vpop.f32.mrb[0].mxu0
        %2327 = vmatprep.mubr.bf16.mxu0 0
        %2328 = vmatmul.mubr.bf16.gmra.mrb[0].mxu0 %v2238
        %v2329 = vpop.f32.mrb[0].mxu0
        %v2330 = vadd.f32 0.0, %v2329
        %v2331 = vpop.f32.mrb[0].mxu0
        %v2332 = vpop.f32.mrb[0].mxu0
        %v2333 = vadd.f32 0.0, %v2332
        %v2334 = vpop.f32.mrb[0].mxu0
        %2335 = vdwg.mxu0
        %s2336 = scalar_lea.vmem %s177, 128 [#allocation7]
        %2337 = vst [vmem:[%s2336] sm:$0xff] %v2274
        %2338 = vst [vmem:[%s2336 + $0x8] sm:$0xff] %v2277
        %2339 = vst [vmem:[%s2336 + $0x10] sm:$0xff] %v2282
        %2340 = vst [vmem:[%s2336 + $0x18] sm:$0xff] %v2285
        %2341 = vst [vmem:[%s2336 + $0x20] sm:$0xff] %v2290
        %2342 = vst [vmem:[%s2336 + $0x28] sm:$0xff] %v2293
        %2343 = vst [vmem:[%s2336 + $0x30] sm:$0xff] %v2298
        %2344 = vst [vmem:[%s2336 + $0x38] sm:$0xff] %v2301
        %2345 = vst [vmem:[%s2336 + $0x40] sm:$0xff] %v2306
        %2346 = vst [vmem:[%s2336 + $0x48] sm:$0xff] %v2309
        %2347 = vst [vmem:[%s2336 + $0x50] sm:$0xff] %v2314
        %2348 = vst [vmem:[%s2336 + $0x58] sm:$0xff] %v2317
        %2349 = vst [vmem:[%s2336 + $0x60] sm:$0xff] %v2322
        %2350 = vst [vmem:[%s2336 + $0x68] sm:$0xff] %v2325
        %2351 = vst [vmem:[%s2336 + $0x70] sm:$0xff] %v2330
        %2352 = vst [vmem:[%s2336 + $0x78] sm:$0xff] %v2333
        %s2353 = sand.u32 %s75, 1
        %s2354 = scalar_lea.sflag [#allocation4], %s2353
        %s2355 = sand.u32 %s75, 1
        %s2356 = smul.addr %s2355, 256
        %s2357 = scalar_lea.vmem [#allocation7], %s2356
        // Predicated region
        $region37: #{tpu_custom_call.1} parent=27 // pred_check
          %p2358 = pneg %p85
        $region38: #{tpu_custom_call.1} parent=27 // pred_check_branch
          %2360 = sbr.rel (%p2358) target = $region40
        $region39: #{tpu_custom_call.1} parent=27 // pred_region
          %s2361 = smul.u32 2, %s20
          %s2363 = ssub.s32 4096, 4096
          %2364 = vsyncadd %s2354, %s2363
          %s2365 = smul.addr %s2361, 16
          %s2366 = smul.addr %s2365, 128
          %s2367 = scalar_lea.hbm %s2, %s2366
          %s2368 = sshll.u32 %s2357, 4
          %s2369 = int_to_ptr.vmem [resolvable:$true] %s2368
          %2374 = dma.vmem_to_hbm [thread:$0]  %s2369, 4096, %s2367, %s2354, 128, 128, 8
        $region40: #{tpu_custom_call.1} parent=27 // pred_fallthru
          _
      $region28: #{tpu_custom_call.1} parent=5 // pred_fallthru
        _
      %p2375 = scmp.le.s32.totalorder 2, %s15
      // Predicated region
      $region41: #{tpu_custom_call.1} parent=5 // pred_check
        %p2376 = pneg %p2375
      $region42: #{tpu_custom_call.1} parent=5 // pred_check_branch
        %2378 = sbr.rel (%p2376) target = $region44
      $region43: #{tpu_custom_call.1} parent=5 // pred_region
        %s2379 = ssub.s32 %s15, 2
        // Predicated region
        $region45: #{tpu_custom_call.1} parent=43 // pred_check
          %p2380 = pneg %p91
        $region46: #{tpu_custom_call.1} parent=43 // pred_check_branch
          %2382 = sbr.rel (%p2380) target = $region48
        $region47: #{tpu_custom_call.1} parent=43 // pred_region
          %s2383 = sand.u32 %s76, 1
          %s2384 = scalar_lea.sflag [#allocation4], %s2383
          %s2385 = sand.u32 %s76, 1
          %s2386 = smul.addr %s2385, 256
          %s2387 = scalar_lea.vmem [#allocation7], %s2386
          %2388 = dma.done %s2384, 4096
        $region48: #{tpu_custom_call.1} parent=43 // pred_fallthru
          _
      $region44: #{tpu_custom_call.1} parent=5 // pred_fallthru
        _
    $region6: #{tpu_custom_call.1} parent=1 // loop_footer
      %s19 = sadd.s32 1, %s15
    $region7: #{tpu_custom_call.1} parent=1 // loop_footer_branch
      %14 = sbr.rel target = $region3
    $region8: #{tpu_custom_call.1} parent=1 // loop_exit
      _
    %2389 = vsyncpa [#allocation3], 1
    %s2390 = scalar_lea.sflag [#allocation3], 1
    %2391 = vsyncpa %s2390, 1
    %2392 = vsyncpa [#allocation6], 1
    %2393 = vsyncpa [#allocation4], 1
    %s2394 = scalar_lea.sflag [#allocation4], 1
    %2395 = vsyncpa %s2394, 1

</llo_original>
